<compile_context>
chip_gen: v7x
topology: tpu7x:2x2x1
jax: 0.10.0
libtpu: 0.0.40
codegen_flags: <defaults>
</compile_context>

<pallas_src>
import functools

import jax
import jax.numpy as jnp
from jax.experimental import pallas as pl
from jax.experimental.pallas import tpu as pltpu


def _round_up(x, m):
    return ((x + m - 1) // m) * m


def _actor_kernel(x_ref,
                  w1_ref, b1_ref,
                  w2_ref, b2_ref,
                  w3_ref, b3_ref,
                  w4_ref, b4_ref,
                  w5_ref, b5_ref,
                  out_ref,
                  *, sigmoid_output):
    """One batch tile of the 5-layer MLP.

    Weights/biases are VMEM-resident. MXU in bf16 with f32 accumulation; bias
    add + activation in f32 on the VPU/EUP, hidden activations handed to the
    next layer as bf16.
    """
    def layer(h_bf16, w_ref, b_ref):
        # b is (1, F): clean 2-D row broadcast in f32.
        return jnp.dot(h_bf16, w_ref[...],
                       preferred_element_type=jnp.float32) + b_ref[...]

    def hidden(h_bf16, w_ref, b_ref):
        # ReLU in f32, then cast once for the next layer's MXU input.
        return jnp.maximum(layer(h_bf16, w_ref, b_ref), 0.0).astype(jnp.bfloat16)

    h = x_ref[...].astype(jnp.bfloat16)
    h = hidden(h, w1_ref, b1_ref)
    h = hidden(h, w2_ref, b2_ref)
    h = hidden(h, w3_ref, b3_ref)
    h = hidden(h, w4_ref, b4_ref)
    y = layer(h, w5_ref, b5_ref)                      # (tb, out_pad) f32

    y = jax.nn.sigmoid(y) if sigmoid_output else jnp.tanh(y)
    # Store only the real output columns: out_ref is (tb, output_size), so no
    # padded columns ever reach HBM (kills the 64x f32 write amplification and
    # the wrapper column-slice that re-read it).
    out_ref[...] = y[:, :out_ref.shape[-1]]


def init_actor_params(key, input_size, hidden_size, output_size):
    """Logical (PyTorch-shaped) params. Weights stored as (in, out), f32."""
    dims = [
        (input_size, hidden_size),            # linear1
        (hidden_size, hidden_size * 2),       # linear2
        (hidden_size * 2, hidden_size * 2),   # linear3
        (hidden_size * 2, hidden_size),       # linear4
        (hidden_size, output_size),           # linear5
    ]
    params = {}
    for i, (fan_in, fan_out) in enumerate(dims, start=1):
        key, kw, kb = jax.random.split(key, 3)
        bound = 1.0 / jnp.sqrt(jnp.float32(fan_in))
        params[f"w{i}"] = jax.random.uniform(
            kw, (fan_in, fan_out), jnp.float32, -bound, bound)
        params[f"b{i}"] = jax.random.uniform(
            kb, (fan_out,), jnp.float32, -bound, bound)
    return params


def prepare_actor_params(params):
    """Kernel-ready params: pad feature dims to multiples of 128 (lane-dense),
    cast weights to bf16 (MXU inputs), store biases as (1, F) f32 rows.
    Hidden-layer zero padding is numerically exact (padded columns produce 0
    after ReLU and meet zero weight rows downstream); padded *output* columns
    are computed but never stored by the kernel."""
    kp = {}
    for i in range(1, 6):
        w = params[f"w{i}"]
        b = params[f"b{i}"]
        fan_in, fan_out = w.shape
        # Layer 1's contracted dim is the raw state width (block uses the full
        # dim); all other contracted dims are padded to 128 to match the
        # previous layer's padded output.
        in_pad = fan_in if i == 1 else _round_up(fan_in, 128)
        out_pad = _round_up(fan_out, 128)
        w = jnp.pad(w, ((0, in_pad - fan_in), (0, out_pad - fan_out)))
        b = jnp.pad(b, ((0, out_pad - fan_out),)).reshape(1, out_pad)
        kp[f"w{i}"] = w.astype(jnp.bfloat16)
        kp[f"b{i}"] = b.astype(jnp.float32)
    return kp


def actor_forward(state, kp, *, output_size, sigmoid_output=False, tile_b=4096):
    """state: (B, input_size) f32; kp: prepared params. Returns (B, output_size)."""
    B, S = state.shape
    assert S == kp["w1"].shape[0], (S, kp["w1"].shape)

    # --- batch tiling: large tiles to amortize per-grid-step overhead ---
    b8 = _round_up(B, 8)
    tb = min(tile_b, b8)
    # v7x has 2 TensorCores: whenever there is enough work to split, make the
    # "parallel" batch grid have >= 2 steps (no-op on single-TC v5e/v6e).
    if tb == b8 and b8 >= 16:
        tb = _round_up((b8 + 1) // 2, 8)
    b_pad = _round_up(b8, tb)
    if b_pad != B:
        state = jnp.pad(state, ((0, b_pad - B), (0, 0)))
    grid = (b_pad // tb,)

    const_map = lambda i: (0, 0)   # weights/biases resident: one DMA total
    kernel = functools.partial(_actor_kernel, sigmoid_output=sigmoid_output)

    def run(single_buffer_weights):
        # Constant-index weights gain nothing from double buffering; single
        # buffering halves their VMEM footprint (matters for large hidden
        # sizes on v7x's 64 MiB VMEM). State input / output keep the default
        # double buffering so the batch pipeline still overlaps DMA + compute.
        w_kwargs = (dict(pipeline_mode=pl.Buffered(1))
                    if single_buffer_weights else {})

        operands = [state]
        in_specs = [pl.BlockSpec((tb, S), lambda i: (i, 0))]
        for li in range(1, 6):
            w = kp[f"w{li}"]
            b = kp[f"b{li}"]
            operands += [w, b]
            in_specs += [pl.BlockSpec(w.shape, const_map, **w_kwargs),
                         pl.BlockSpec(b.shape, const_map, **w_kwargs)]

        return pl.pallas_call(
            kernel,
            out_shape=jax.ShapeDtypeStruct((b_pad, output_size), jnp.float32),
            grid=grid,
            in_specs=in_specs,
            out_specs=pl.BlockSpec((tb, output_size), lambda i: (i, 0)),
            compiler_params=pltpu.CompilerParams(
                dimension_semantics=("parallel",),
                vmem_limit_bytes=64 * 1024 * 1024),
        )(*operands)

    try:
        out = run(single_buffer_weights=True)
    except Exception:
        # Older jax versions may reject Buffered(1); identical semantics with
        # default buffering, just a larger resident-weight VMEM footprint.
        out = run(single_buffer_weights=False)

    # Only batch padding (if any) needs slicing; output columns are exact.
    return out[:B] if b_pad != B else out


def actor_forward_ref(state, params, sigmoid_output=False):
    """Pure-JAX f32 reference matching the PyTorch module."""
    h = jax.nn.relu(state @ params["w1"] + params["b1"])
    h = jax.nn.relu(h @ params["w2"] + params["b2"])
    h = jax.nn.relu(h @ params["w3"] + params["b3"])
    h = jax.nn.relu(h @ params["w4"] + params["b4"])
    y = h @ params["w5"] + params["b5"]
    return jax.nn.sigmoid(y) if sigmoid_output else jnp.tanh(y)


def actor_forward_ref_bf16(state, kp, output_size, sigmoid_output=False):
    """Reference with the same bf16-input / f32-accumulate numerics as the kernel."""
    h = state.astype(jnp.bfloat16)
    for i in range(1, 5):
        h = jnp.maximum(
            jnp.dot(h, kp[f"w{i}"], preferred_element_type=jnp.float32)
            + kp[f"b{i}"], 0.0).astype(jnp.bfloat16)
    y = jnp.dot(h, kp["w5"], preferred_element_type=jnp.float32) + kp["b5"]
    y = jax.nn.sigmoid(y) if sigmoid_output else jnp.tanh(y)
    return y[:, :output_size]


if __name__ == "__main__":
    # Small shapes consistent with Actor(input_size, hidden_size, output_size)
    B = 2          # batch
    S = 6          # state dim (input_size)
    HIDDEN = 32
    OUTPUT = 2     # action dim

    key = jax.random.PRNGKey(0)
    key, ks, kparams = jax.random.split(key, 3)

    state = jax.random.normal(ks, (B, S), jnp.float32)
    params = init_actor_params(kparams, S, HIDDEN, OUTPUT)
    kp = prepare_actor_params(params)

    # --- tanh head, tiny batch ---
    out = actor_forward(state, kp, output_size=OUTPUT, sigmoid_output=False)
    out = jax.block_until_ready(out)
    assert out.shape == (B, OUTPUT), out.shape
    ref_same = actor_forward_ref_bf16(state, kp, OUTPUT, sigmoid_output=False)
    ref_f32 = actor_forward_ref(state, params, sigmoid_output=False)
    assert jnp.allclose(out, ref_same, atol=1e-3, rtol=1e-3), (out, ref_same)
    assert jnp.allclose(out, ref_f32, atol=3e-2, rtol=3e-2), (out, ref_f32)

    # --- sigmoid head, batch needing padding + a >=2-step parallel grid ---
    B2 = 33
    key, ks2 = jax.random.split(key)
    state2 = jax.random.normal(ks2, (B2, S), jnp.float32)
    out2 = jax.block_until_ready(
        actor_forward(state2, kp, output_size=OUTPUT, sigmoid_output=True))
    assert out2.shape == (B2, OUTPUT), out2.shape
    ref2_same = actor_forward_ref_bf16(state2, kp, OUTPUT, sigmoid_output=True)
    ref2_f32 = actor_forward_ref(state2, params, sigmoid_output=True)
    assert jnp.allclose(out2, ref2_same, atol=1e-3, rtol=1e-3), (out2, ref2_same)
    assert jnp.allclose(out2, ref2_f32, atol=3e-2, rtol=3e-2), (out2, ref2_f32)

    print("KERNEL_OK")
</pallas_src>

<mosaic_0001>
module attributes {stable_mosaic.version = 11 : i64} {
  func.func @_actor_kernel(%arg0: i32, %arg1: memref<8x6xf32, #tpu.memory_space<vmem>>, %arg2: memref<6x128xbf16, #tpu.memory_space<vmem>>, %arg3: memref<1x128xf32, #tpu.memory_space<vmem>>, %arg4: memref<128x128xbf16, #tpu.memory_space<vmem>>, %arg5: memref<1x128xf32, #tpu.memory_space<vmem>>, %arg6: memref<128x128xbf16, #tpu.memory_space<vmem>>, %arg7: memref<1x128xf32, #tpu.memory_space<vmem>>, %arg8: memref<128x128xbf16, #tpu.memory_space<vmem>>, %arg9: memref<1x128xf32, #tpu.memory_space<vmem>>, %arg10: memref<128x128xbf16, #tpu.memory_space<vmem>>, %arg11: memref<1x128xf32, #tpu.memory_space<vmem>>, %arg12: memref<8x2xf32, #tpu.memory_space<vmem>>) attributes {dimension_semantics = [#tpu.dimension_semantics<parallel>], iteration_bounds = array<i64: 1>, scalar_prefetch = 0 : i64, scratch_operands = 0 : i64, tpu.core_type = #tpu.core_type<tc>, window_params = [{transform_indices = @transform_0, window_bounds = array<i64: 8, 6>}, {pipeline_mode = #tpu.pipeline_mode<synchronous>, transform_indices = @transform_1, window_bounds = array<i64: 6, 128>}, {pipeline_mode = #tpu.pipeline_mode<synchronous>, transform_indices = @transform_2, window_bounds = array<i64: 1, 128>}, {pipeline_mode = #tpu.pipeline_mode<synchronous>, transform_indices = @transform_3, window_bounds = array<i64: 128, 128>}, {pipeline_mode = #tpu.pipeline_mode<synchronous>, transform_indices = @transform_4, window_bounds = array<i64: 1, 128>}, {pipeline_mode = #tpu.pipeline_mode<synchronous>, transform_indices = @transform_5, window_bounds = array<i64: 128, 128>}, {pipeline_mode = #tpu.pipeline_mode<synchronous>, transform_indices = @transform_6, window_bounds = array<i64: 1, 128>}, {pipeline_mode = #tpu.pipeline_mode<synchronous>, transform_indices = @transform_7, window_bounds = array<i64: 128, 128>}, {pipeline_mode = #tpu.pipeline_mode<synchronous>, transform_indices = @transform_8, window_bounds = array<i64: 1, 128>}, {pipeline_mode = #tpu.pipeline_mode<synchronous>, transform_indices = @transform_9, window_bounds = array<i64: 128, 128>}, {pipeline_mode = #tpu.pipeline_mode<synchronous>, transform_indices = @transform_10, window_bounds = array<i64: 1, 128>}, {transform_indices = @transform_11, window_bounds = array<i64: 8, 2>}]} {
    %c0 = arith.constant 0 : index
    %c0_0 = arith.constant 0 : index
    %0 = vector.load %arg1[%c0, %c0_0] : memref<8x6xf32, #tpu.memory_space<vmem>>, vector<8x6xf32>
    %1 = arith.truncf %0 : vector<8x6xf32> to vector<8x6xbf16>
    %c0_1 = arith.constant 0 : index
    %c0_2 = arith.constant 0 : index
    %2 = vector.load %arg2[%c0_1, %c0_2] : memref<6x128xbf16, #tpu.memory_space<vmem>>, vector<6x128xbf16>
    %cst = arith.constant dense<0.000000e+00> : vector<8x128xf32>
    %3 = tpu.matmul %1, %2, %cst {dimension_numbers = #tpu.dot_dimension_numbers<[1], [0], [0], [1], [0, 0, 1, 1], [], []>} : vector<8x6xbf16>, vector<6x128xbf16>, vector<8x128xf32> -> vector<8x128xf32>
    %c0_3 = arith.constant 0 : index
    %c0_4 = arith.constant 0 : index
    %4 = vector.load %arg3[%c0_3, %c0_4] : memref<1x128xf32, #tpu.memory_space<vmem>>, vector<1x128xf32>
    %5 = vector.broadcast %4 : vector<1x128xf32> to vector<8x128xf32>
    %6 = arith.addf %3, %5 : vector<8x128xf32>
    %cst_5 = arith.constant 0.000000e+00 : f32
    %7 = vector.broadcast %cst_5 : f32 to vector<8x128xf32>
    %8 = arith.maximumf %6, %7 : vector<8x128xf32>
    %9 = arith.truncf %8 : vector<8x128xf32> to vector<8x128xbf16>
    %c0_6 = arith.constant 0 : index
    %c0_7 = arith.constant 0 : index
    %10 = vector.load %arg4[%c0_6, %c0_7] : memref<128x128xbf16, #tpu.memory_space<vmem>>, vector<128x128xbf16>
    %cst_8 = arith.constant dense<0.000000e+00> : vector<8x128xf32>
    %11 = tpu.matmul %9, %10, %cst_8 {dimension_numbers = #tpu.dot_dimension_numbers<[1], [0], [0], [1], [0, 0, 1, 1], [], []>} : vector<8x128xbf16>, vector<128x128xbf16>, vector<8x128xf32> -> vector<8x128xf32>
    %c0_9 = arith.constant 0 : index
    %c0_10 = arith.constant 0 : index
    %12 = vector.load %arg5[%c0_9, %c0_10] : memref<1x128xf32, #tpu.memory_space<vmem>>, vector<1x128xf32>
    %13 = vector.broadcast %12 : vector<1x128xf32> to vector<8x128xf32>
    %14 = arith.addf %11, %13 : vector<8x128xf32>
    %cst_11 = arith.constant 0.000000e+00 : f32
    %15 = vector.broadcast %cst_11 : f32 to vector<8x128xf32>
    %16 = arith.maximumf %14, %15 : vector<8x128xf32>
    %17 = arith.truncf %16 : vector<8x128xf32> to vector<8x128xbf16>
    %c0_12 = arith.constant 0 : index
    %c0_13 = arith.constant 0 : index
    %18 = vector.load %arg6[%c0_12, %c0_13] : memref<128x128xbf16, #tpu.memory_space<vmem>>, vector<128x128xbf16>
    %cst_14 = arith.constant dense<0.000000e+00> : vector<8x128xf32>
    %19 = tpu.matmul %17, %18, %cst_14 {dimension_numbers = #tpu.dot_dimension_numbers<[1], [0], [0], [1], [0, 0, 1, 1], [], []>} : vector<8x128xbf16>, vector<128x128xbf16>, vector<8x128xf32> -> vector<8x128xf32>
    %c0_15 = arith.constant 0 : index
    %c0_16 = arith.constant 0 : index
    %20 = vector.load %arg7[%c0_15, %c0_16] : memref<1x128xf32, #tpu.memory_space<vmem>>, vector<1x128xf32>
    %21 = vector.broadcast %20 : vector<1x128xf32> to vector<8x128xf32>
    %22 = arith.addf %19, %21 : vector<8x128xf32>
    %cst_17 = arith.constant 0.000000e+00 : f32
    %23 = vector.broadcast %cst_17 : f32 to vector<8x128xf32>
    %24 = arith.maximumf %22, %23 : vector<8x128xf32>
    %25 = arith.truncf %24 : vector<8x128xf32> to vector<8x128xbf16>
    %c0_18 = arith.constant 0 : index
    %c0_19 = arith.constant 0 : index
    %26 = vector.load %arg8[%c0_18, %c0_19] : memref<128x128xbf16, #tpu.memory_space<vmem>>, vector<128x128xbf16>
    %cst_20 = arith.constant dense<0.000000e+00> : vector<8x128xf32>
    %27 = tpu.matmul %25, %26, %cst_20 {dimension_numbers = #tpu.dot_dimension_numbers<[1], [0], [0], [1], [0, 0, 1, 1], [], []>} : vector<8x128xbf16>, vector<128x128xbf16>, vector<8x128xf32> -> vector<8x128xf32>
    %c0_21 = arith.constant 0 : index
    %c0_22 = arith.constant 0 : index
    %28 = vector.load %arg9[%c0_21, %c0_22] : memref<1x128xf32, #tpu.memory_space<vmem>>, vector<1x128xf32>
    %29 = vector.broadcast %28 : vector<1x128xf32> to vector<8x128xf32>
    %30 = arith.addf %27, %29 : vector<8x128xf32>
    %cst_23 = arith.constant 0.000000e+00 : f32
    %31 = vector.broadcast %cst_23 : f32 to vector<8x128xf32>
    %32 = arith.maximumf %30, %31 : vector<8x128xf32>
    %33 = arith.truncf %32 : vector<8x128xf32> to vector<8x128xbf16>
    %c0_24 = arith.constant 0 : index
    %c0_25 = arith.constant 0 : index
    %34 = vector.load %arg10[%c0_24, %c0_25] : memref<128x128xbf16, #tpu.memory_space<vmem>>, vector<128x128xbf16>
    %cst_26 = arith.constant dense<0.000000e+00> : vector<8x128xf32>
    %35 = tpu.matmul %33, %34, %cst_26 {dimension_numbers = #tpu.dot_dimension_numbers<[1], [0], [0], [1], [0, 0, 1, 1], [], []>} : vector<8x128xbf16>, vector<128x128xbf16>, vector<8x128xf32> -> vector<8x128xf32>
    %c0_27 = arith.constant 0 : index
    %c0_28 = arith.constant 0 : index
    %36 = vector.load %arg11[%c0_27, %c0_28] : memref<1x128xf32, #tpu.memory_space<vmem>>, vector<1x128xf32>
    %37 = vector.broadcast %36 : vector<1x128xf32> to vector<8x128xf32>
    %38 = arith.addf %35, %37 : vector<8x128xf32>
    %39 = math.tanh %38 : vector<8x128xf32>
    %40 = vector.extract_strided_slice %39 {offsets = [0, 0], sizes = [8, 2], strides = [1, 1]} : vector<8x128xf32> to vector<8x2xf32>
    %c0_29 = arith.constant 0 : index
    %c0_30 = arith.constant 0 : index
    %41 = vector.load %arg12[%c0_29, %c0_30] : memref<8x2xf32, #tpu.memory_space<vmem>>, vector<8x2xf32>
    tpu.vector_store %arg12[%c0_29, %c0_30], %40 {strides = array<i32>} : memref<8x2xf32, #tpu.memory_space<vmem>>, vector<8x2xf32>,
    return
  }
  func.func @transform_0(%arg0: i32) -> (i32, i32) {
    %c0_i32 = arith.constant 0 : i32
    %c0_i32_0 = arith.constant 0 : i32
    return %arg0, %c0_i32 : i32, i32
  }
  func.func @transform_1(%arg0: i32) -> (i32, i32) {
    %c0_i32 = arith.constant 0 : i32
    %c0_i32_0 = arith.constant 0 : i32
    %c0_i32_1 = arith.constant 0 : i32
    return %c0_i32, %c0_i32_0 : i32, i32
  }
  func.func @transform_2(%arg0: i32) -> (i32, i32) {
    %c0_i32 = arith.constant 0 : i32
    %c0_i32_0 = arith.constant 0 : i32
    %c0_i32_1 = arith.constant 0 : i32
    return %c0_i32, %c0_i32_0 : i32, i32
  }
  func.func @transform_3(%arg0: i32) -> (i32, i32) {
    %c0_i32 = arith.constant 0 : i32
    %c0_i32_0 = arith.constant 0 : i32
    %c0_i32_1 = arith.constant 0 : i32
    return %c0_i32, %c0_i32_0 : i32, i32
  }
  func.func @transform_4(%arg0: i32) -> (i32, i32) {
    %c0_i32 = arith.constant 0 : i32
    %c0_i32_0 = arith.constant 0 : i32
    %c0_i32_1 = arith.constant 0 : i32
    return %c0_i32, %c0_i32_0 : i32, i32
  }
  func.func @transform_5(%arg0: i32) -> (i32, i32) {
    %c0_i32 = arith.constant 0 : i32
    %c0_i32_0 = arith.constant 0 : i32
    %c0_i32_1 = arith.constant 0 : i32
    return %c0_i32, %c0_i32_0 : i32, i32
  }
  func.func @transform_6(%arg0: i32) -> (i32, i32) {
    %c0_i32 = arith.constant 0 : i32
    %c0_i32_0 = arith.constant 0 : i32
    %c0_i32_1 = arith.constant 0 : i32
    return %c0_i32, %c0_i32_0 : i32, i32
  }
  func.func @transform_7(%arg0: i32) -> (i32, i32) {
    %c0_i32 = arith.constant 0 : i32
    %c0_i32_0 = arith.constant 0 : i32
    %c0_i32_1 = arith.constant 0 : i32
    return %c0_i32, %c0_i32_0 : i32, i32
  }
  func.func @transform_8(%arg0: i32) -> (i32, i32) {
    %c0_i32 = arith.constant 0 : i32
    %c0_i32_0 = arith.constant 0 : i32
    %c0_i32_1 = arith.constant 0 : i32
    return %c0_i32, %c0_i32_0 : i32, i32
  }
  func.func @transform_9(%arg0: i32) -> (i32, i32) {
    %c0_i32 = arith.constant 0 : i32
    %c0_i32_0 = arith.constant 0 : i32
    %c0_i32_1 = arith.constant 0 : i32
    return %c0_i32, %c0_i32_0 : i32, i32
  }
  func.func @transform_10(%arg0: i32) -> (i32, i32) {
    %c0_i32 = arith.constant 0 : i32
    %c0_i32_0 = arith.constant 0 : i32
    %c0_i32_1 = arith.constant 0 : i32
    return %c0_i32, %c0_i32_0 : i32, i32
  }
  func.func @transform_11(%arg0: i32) -> (i32, i32) {
    %c0_i32 = arith.constant 0 : i32
    %c0_i32_0 = arith.constant 0 : i32
    return %arg0, %c0_i32 : i32, i32
  }
}

module attributes {stable_mosaic.version = 11 : i64} {
  func.func @_actor_kernel(%arg0: i32, %arg1: memref<8x6xf32, #tpu.memory_space<vmem>>, %arg2: memref<6x128xbf16, #tpu.memory_space<vmem>>, %arg3: memref<1x128xf32, #tpu.memory_space<vmem>>, %arg4: memref<128x128xbf16, #tpu.memory_space<vmem>>, %arg5: memref<1x128xf32, #tpu.memory_space<vmem>>, %arg6: memref<128x128xbf16, #tpu.memory_space<vmem>>, %arg7: memref<1x128xf32, #tpu.memory_space<vmem>>, %arg8: memref<128x128xbf16, #tpu.memory_space<vmem>>, %arg9: memref<1x128xf32, #tpu.memory_space<vmem>>, %arg10: memref<128x128xbf16, #tpu.memory_space<vmem>>, %arg11: memref<1x128xf32, #tpu.memory_space<vmem>>, %arg12: memref<8x2xf32, #tpu.memory_space<vmem>>) attributes {dimension_semantics = [#tpu.dimension_semantics<parallel>], iteration_bounds = array<i64: 1>, scalar_prefetch = 0 : i64, scratch_operands = 0 : i64, tpu.core_type = #tpu.core_type<tc>, window_params = [{transform_indices = @transform_0, window_bounds = array<i64: 8, 6>}, {pipeline_mode = #tpu.pipeline_mode<synchronous>, transform_indices = @transform_1, window_bounds = array<i64: 6, 128>}, {pipeline_mode = #tpu.pipeline_mode<synchronous>, transform_indices = @transform_2, window_bounds = array<i64: 1, 128>}, {pipeline_mode = #tpu.pipeline_mode<synchronous>, transform_indices = @transform_3, window_bounds = array<i64: 128, 128>}, {pipeline_mode = #tpu.pipeline_mode<synchronous>, transform_indices = @transform_4, window_bounds = array<i64: 1, 128>}, {pipeline_mode = #tpu.pipeline_mode<synchronous>, transform_indices = @transform_5, window_bounds = array<i64: 128, 128>}, {pipeline_mode = #tpu.pipeline_mode<synchronous>, transform_indices = @transform_6, window_bounds = array<i64: 1, 128>}, {pipeline_mode = #tpu.pipeline_mode<synchronous>, transform_indices = @transform_7, window_bounds = array<i64: 128, 128>}, {pipeline_mode = #tpu.pipeline_mode<synchronous>, transform_indices = @transform_8, window_bounds = array<i64: 1, 128>}, {pipeline_mode = #tpu.pipeline_mode<synchronous>, transform_indices = @transform_9, window_bounds = array<i64: 128, 128>}, {pipeline_mode = #tpu.pipeline_mode<synchronous>, transform_indices = @transform_10, window_bounds = array<i64: 1, 128>}, {transform_indices = @transform_11, window_bounds = array<i64: 8, 2>}]} {
    %c0 = arith.constant 0 : index
    %c0_0 = arith.constant 0 : index
    %0 = vector.load %arg1[%c0, %c0_0] : memref<8x6xf32, #tpu.memory_space<vmem>>, vector<8x6xf32>
    %1 = arith.truncf %0 : vector<8x6xf32> to vector<8x6xbf16>
    %c0_1 = arith.constant 0 : index
    %c0_2 = arith.constant 0 : index
    %2 = vector.load %arg2[%c0_1, %c0_2] : memref<6x128xbf16, #tpu.memory_space<vmem>>, vector<6x128xbf16>
    %cst = arith.constant dense<0.000000e+00> : vector<8x128xf32>
    %3 = tpu.matmul %1, %2, %cst {dimension_numbers = #tpu.dot_dimension_numbers<[1], [0], [0], [1], [0, 0, 1, 1], [], []>} : vector<8x6xbf16>, vector<6x128xbf16>, vector<8x128xf32> -> vector<8x128xf32>
    %c0_3 = arith.constant 0 : index
    %c0_4 = arith.constant 0 : index
    %4 = vector.load %arg3[%c0_3, %c0_4] : memref<1x128xf32, #tpu.memory_space<vmem>>, vector<1x128xf32>
    %5 = vector.broadcast %4 : vector<1x128xf32> to vector<8x128xf32>
    %6 = arith.addf %3, %5 : vector<8x128xf32>
    %cst_5 = arith.constant 0.000000e+00 : f32
    %7 = vector.broadcast %cst_5 : f32 to vector<8x128xf32>
    %8 = arith.maximumf %6, %7 : vector<8x128xf32>
    %9 = arith.truncf %8 : vector<8x128xf32> to vector<8x128xbf16>
    %c0_6 = arith.constant 0 : index
    %c0_7 = arith.constant 0 : index
    %10 = vector.load %arg4[%c0_6, %c0_7] : memref<128x128xbf16, #tpu.memory_space<vmem>>, vector<128x128xbf16>
    %cst_8 = arith.constant dense<0.000000e+00> : vector<8x128xf32>
    %11 = tpu.matmul %9, %10, %cst_8 {dimension_numbers = #tpu.dot_dimension_numbers<[1], [0], [0], [1], [0, 0, 1, 1], [], []>} : vector<8x128xbf16>, vector<128x128xbf16>, vector<8x128xf32> -> vector<8x128xf32>
    %c0_9 = arith.constant 0 : index
    %c0_10 = arith.constant 0 : index
    %12 = vector.load %arg5[%c0_9, %c0_10] : memref<1x128xf32, #tpu.memory_space<vmem>>, vector<1x128xf32>
    %13 = vector.broadcast %12 : vector<1x128xf32> to vector<8x128xf32>
    %14 = arith.addf %11, %13 : vector<8x128xf32>
    %cst_11 = arith.constant 0.000000e+00 : f32
    %15 = vector.broadcast %cst_11 : f32 to vector<8x128xf32>
    %16 = arith.maximumf %14, %15 : vector<8x128xf32>
    %17 = arith.truncf %16 : vector<8x128xf32> to vector<8x128xbf16>
    %c0_12 = arith.constant 0 : index
    %c0_13 = arith.constant 0 : index
    %18 = vector.load %arg6[%c0_12, %c0_13] : memref<128x128xbf16, #tpu.memory_space<vmem>>, vector<128x128xbf16>
    %cst_14 = arith.constant dense<0.000000e+00> : vector<8x128xf32>
    %19 = tpu.matmul %17, %18, %cst_14 {dimension_numbers = #tpu.dot_dimension_numbers<[1], [0], [0], [1], [0, 0, 1, 1], [], []>} : vector<8x128xbf16>, vector<128x128xbf16>, vector<8x128xf32> -> vector<8x128xf32>
    %c0_15 = arith.constant 0 : index
    %c0_16 = arith.constant 0 : index
    %20 = vector.load %arg7[%c0_15, %c0_16] : memref<1x128xf32, #tpu.memory_space<vmem>>, vector<1x128xf32>
    %21 = vector.broadcast %20 : vector<1x128xf32> to vector<8x128xf32>
    %22 = arith.addf %19, %21 : vector<8x128xf32>
    %cst_17 = arith.constant 0.000000e+00 : f32
    %23 = vector.broadcast %cst_17 : f32 to vector<8x128xf32>
    %24 = arith.maximumf %22, %23 : vector<8x128xf32>
    %25 = arith.truncf %24 : vector<8x128xf32> to vector<8x128xbf16>
    %c0_18 = arith.constant 0 : index
    %c0_19 = arith.constant 0 : index
    %26 = vector.load %arg8[%c0_18, %c0_19] : memref<128x128xbf16, #tpu.memory_space<vmem>>, vector<128x128xbf16>
    %cst_20 = arith.constant dense<0.000000e+00> : vector<8x128xf32>
    %27 = tpu.matmul %25, %26, %cst_20 {dimension_numbers = #tpu.dot_dimension_numbers<[1], [0], [0], [1], [0, 0, 1, 1], [], []>} : vector<8x128xbf16>, vector<128x128xbf16>, vector<8x128xf32> -> vector<8x128xf32>
    %c0_21 = arith.constant 0 : index
    %c0_22 = arith.constant 0 : index
    %28 = vector.load %arg9[%c0_21, %c0_22] : memref<1x128xf32, #tpu.memory_space<vmem>>, vector<1x128xf32>
    %29 = vector.broadcast %28 : vector<1x128xf32> to vector<8x128xf32>
    %30 = arith.addf %27, %29 : vector<8x128xf32>
    %cst_23 = arith.constant 0.000000e+00 : f32
    %31 = vector.broadcast %cst_23 : f32 to vector<8x128xf32>
    %32 = arith.maximumf %30, %31 : vector<8x128xf32>
    %33 = arith.truncf %32 : vector<8x128xf32> to vector<8x128xbf16>
    %c0_24 = arith.constant 0 : index
    %c0_25 = arith.constant 0 : index
    %34 = vector.load %arg10[%c0_24, %c0_25] : memref<128x128xbf16, #tpu.memory_space<vmem>>, vector<128x128xbf16>
    %cst_26 = arith.constant dense<0.000000e+00> : vector<8x128xf32>
    %35 = tpu.matmul %33, %34, %cst_26 {dimension_numbers = #tpu.dot_dimension_numbers<[1], [0], [0], [1], [0, 0, 1, 1], [], []>} : vector<8x128xbf16>, vector<128x128xbf16>, vector<8x128xf32> -> vector<8x128xf32>
    %c0_27 = arith.constant 0 : index
    %c0_28 = arith.constant 0 : index
    %36 = vector.load %arg11[%c0_27, %c0_28] : memref<1x128xf32, #tpu.memory_space<vmem>>, vector<1x128xf32>
    %37 = vector.broadcast %36 : vector<1x128xf32> to vector<8x128xf32>
    %38 = arith.addf %35, %37 : vector<8x128xf32>
    %39 = math.tanh %38 : vector<8x128xf32>
    %40 = vector.extract_strided_slice %39 {offsets = [0, 0], sizes = [8, 2], strides = [1, 1]} : vector<8x128xf32> to vector<8x2xf32>
    %c0_29 = arith.constant 0 : index
    %c0_30 = arith.constant 0 : index
    %41 = vector.load %arg12[%c0_29, %c0_30] : memref<8x2xf32, #tpu.memory_space<vmem>>, vector<8x2xf32>
    tpu.vector_store %arg12[%c0_29, %c0_30], %40 {strides = array<i32>} : memref<8x2xf32, #tpu.memory_space<vmem>>, vector<8x2xf32>,
    return
  }
  func.func @transform_0(%arg0: i32) -> (i32, i32) {
    %c0_i32 = arith.constant 0 : i32
    %c0_i32_0 = arith.constant 0 : i32
    return %arg0, %c0_i32 : i32, i32
  }
  func.func @transform_1(%arg0: i32) -> (i32, i32) {
    %c0_i32 = arith.constant 0 : i32
    %c0_i32_0 = arith.constant 0 : i32
    %c0_i32_1 = arith.constant 0 : i32
    return %c0_i32, %c0_i32_0 : i32, i32
  }
  func.func @transform_2(%arg0: i32) -> (i32, i32) {
    %c0_i32 = arith.constant 0 : i32
    %c0_i32_0 = arith.constant 0 : i32
    %c0_i32_1 = arith.constant 0 : i32
    return %c0_i32, %c0_i32_0 : i32, i32
  }
  func.func @transform_3(%arg0: i32) -> (i32, i32) {
    %c0_i32 = arith.constant 0 : i32
    %c0_i32_0 = arith.constant 0 : i32
    %c0_i32_1 = arith.constant 0 : i32
    return %c0_i32, %c0_i32_0 : i32, i32
  }
  func.func @transform_4(%arg0: i32) -> (i32, i32) {
    %c0_i32 = arith.constant 0 : i32
    %c0_i32_0 = arith.constant 0 : i32
    %c0_i32_1 = arith.constant 0 : i32
    return %c0_i32, %c0_i32_0 : i32, i32
  }
  func.func @transform_5(%arg0: i32) -> (i32, i32) {
    %c0_i32 = arith.constant 0 : i32
    %c0_i32_0 = arith.constant 0 : i32
    %c0_i32_1 = arith.constant 0 : i32
    return %c0_i32, %c0_i32_0 : i32, i32
  }
  func.func @transform_6(%arg0: i32) -> (i32, i32) {
    %c0_i32 = arith.constant 0 : i32
    %c0_i32_0 = arith.constant 0 : i32
    %c0_i32_1 = arith.constant 0 : i32
    return %c0_i32, %c0_i32_0 : i32, i32
  }
  func.func @transform_7(%arg0: i32) -> (i32, i32) {
    %c0_i32 = arith.constant 0 : i32
    %c0_i32_0 = arith.constant 0 : i32
    %c0_i32_1 = arith.constant 0 : i32
    return %c0_i32, %c0_i32_0 : i32, i32
  }
  func.func @transform_8(%arg0: i32) -> (i32, i32) {
    %c0_i32 = arith.constant 0 : i32
    %c0_i32_0 = arith.constant 0 : i32
    %c0_i32_1 = arith.constant 0 : i32
    return %c0_i32, %c0_i32_0 : i32, i32
  }
  func.func @transform_9(%arg0: i32) -> (i32, i32) {
    %c0_i32 = arith.constant 0 : i32
    %c0_i32_0 = arith.constant 0 : i32
    %c0_i32_1 = arith.constant 0 : i32
    return %c0_i32, %c0_i32_0 : i32, i32
  }
  func.func @transform_10(%arg0: i32) -> (i32, i32) {
    %c0_i32 = arith.constant 0 : i32
    %c0_i32_0 = arith.constant 0 : i32
    %c0_i32_1 = arith.constant 0 : i32
    return %c0_i32, %c0_i32_0 : i32, i32
  }
  func.func @transform_11(%arg0: i32) -> (i32, i32) {
    %c0_i32 = arith.constant 0 : i32
    %c0_i32_0 = arith.constant 0 : i32
    return %arg0, %c0_i32 : i32, i32
  }
}

</mosaic_0001>

<llo_original>
// kernel: tpu_custom_call.1
$region0: #{tpu_custom_call.1}
  #allocation0 [shape = 'u32[]', space=smem, size = 0x4, offset = 0x4, fixed_abs, tag = 'smem constant byte address 0x4 - core index']
  #allocation1 [shape = 'u32[144,128]{1,0:T(1,128)}', space=vmem, size = 0x12000, scoped, tag = 'internal scratch']
  %s0 = inlined_call_operand.hbm [shape: f32[8,6], index: 0, kind: input, shape index: {}]
  %s1 = inlined_call_operand.hbm [shape: bf16[6,128], index: 1, kind: input, shape index: {}]
  %s2 = inlined_call_operand.hbm [shape: f32[1,128], index: 2, kind: input, shape index: {}]
  %s3 = inlined_call_operand.hbm [shape: bf16[128,128], index: 3, kind: input, shape index: {}]
  %s4 = inlined_call_operand.hbm [shape: f32[1,128], index: 4, kind: input, shape index: {}]
  %s5 = inlined_call_operand.hbm [shape: bf16[128,128], index: 5, kind: input, shape index: {}]
  %s6 = inlined_call_operand.hbm [shape: f32[1,128], index: 6, kind: input, shape index: {}]
  %s7 = inlined_call_operand.hbm [shape: bf16[128,128], index: 7, kind: input, shape index: {}]
  %s8 = inlined_call_operand.hbm [shape: f32[1,128], index: 8, kind: input, shape index: {}]
  %s9 = inlined_call_operand.hbm [shape: bf16[128,128], index: 9, kind: input, shape index: {}]
  %s10 = inlined_call_operand.hbm [shape: f32[1,128], index: 10, kind: input, shape index: {}]
  %s11 = inlined_call_operand.hbm [shape: f32[8,2], index: 11, kind: output, shape index: {}]
  %s12 = sld [smem:[#allocation0]]
  $region98: #{tpu_custom_call.1} parent=0
    _
  %s14 = ssub.s32 1, %s12
  %s15 = scalar_select 0, %s14, %s12
  $region1: #{tpu_custom_call.1} parent=0
    #allocation2 [shape = 'u8[4096]{0}', space=vmem, size = 0x1000, scoped, tag = 'input window, operand 0, single buffered']
    #allocation3 [shape = 's32[1]{0}', space=sflag, size = 0x4, scoped, tag = 'scoped memory for tpu_custom_call.1']
    #allocation4 [shape = 's32[1]{0}', space=sflag, size = 0x4, scoped, tag = 'scoped memory for tpu_custom_call.1']
    #allocation5 [shape = 'u8[2048]{0}', space=vmem, size = 0x800, scoped, tag = 'input window, operand 1, single buffered']
    #allocation6 [shape = 's32[1]{0}', space=sflag, size = 0x4, scoped, tag = 'scoped memory for tpu_custom_call.1']
    #allocation7 [shape = 'u8[512]{0}', space=vmem, size = 0x400, scoped, tag = 'input window, operand 2, single buffered']
    #allocation8 [shape = 'u8[32768]{0}', space=vmem, size = 0x8000, scoped, tag = 'input window, operand 3, single buffered']
    #allocation9 [shape = 's32[1]{0}', space=sflag, size = 0x4, scoped, tag = 'scoped memory for tpu_custom_call.1']
    #allocation10 [shape = 'u8[512]{0}', space=vmem, size = 0x400, scoped, tag = 'input window, operand 4, single buffered']
    #allocation11 [shape = 'u8[32768]{0}', space=vmem, size = 0x8000, scoped, tag = 'input window, operand 5, single buffered']
    #allocation12 [shape = 's32[1]{0}', space=sflag, size = 0x4, scoped, tag = 'scoped memory for tpu_custom_call.1']
    #allocation13 [shape = 'u8[512]{0}', space=vmem, size = 0x400, scoped, tag = 'input window, operand 6, single buffered']
    #allocation14 [shape = 'u8[32768]{0}', space=vmem, size = 0x8000, scoped, tag = 'input window, operand 7, single buffered']
    #allocation15 [shape = 's32[1]{0}', space=sflag, size = 0x4, scoped, tag = 'scoped memory for tpu_custom_call.1']
    #allocation16 [shape = 'u8[512]{0}', space=vmem, size = 0x400, scoped, tag = 'input window, operand 8, single buffered']
    #allocation17 [shape = 'u8[32768]{0}', space=vmem, size = 0x8000, scoped, tag = 'input window, operand 9, single buffered']
    #allocation18 [shape = 's32[1]{0}', space=sflag, size = 0x4, scoped, tag = 'scoped memory for tpu_custom_call.1']
    #allocation19 [shape = 'u8[512]{0}', space=vmem, size = 0x400, scoped, tag = 'input window, operand 10, single buffered']
    #allocation20 [shape = 'u8[4096]{0}', space=vmem, size = 0x1000, scoped, tag = 'output window, operand 0, single buffered']
    %16 = vsyncpa [#allocation3], 0
    %17 = vsyncpa [#allocation6], 0
    %18 = vsyncpa [#allocation9], 0
    %19 = vsyncpa [#allocation12], 0
    %20 = vsyncpa [#allocation15], 0
    %21 = vsyncpa [#allocation18], 0
    %22 = vsyncpa [#allocation4], 0
    // Predicated region
    $region2: #{tpu_custom_call.1} parent=1 // pred_check
      _
    $region3: #{tpu_custom_call.1} parent=1 // pred_check_branch
      %24 = sbr.rel (0) target = $region5
    $region4: #{tpu_custom_call.1} parent=1 // pred_region
      %s26 = ssub.s32 128, 128
      %27 = vsyncadd [#allocation3], %s26
      %s29 = sshll.u32 [#allocation2], 4
      %s30 = int_to_ptr.vmem [resolvable:$true] %s29
      %32 = dma.hbm_to_vmem [thread:$0]  %s0, 128, %s30, [#allocation3]
    $region5: #{tpu_custom_call.1} parent=1 // pred_fallthru
      _
    // Predicated region
    $region6: #{tpu_custom_call.1} parent=1 // pred_check
      _
    $region7: #{tpu_custom_call.1} parent=1 // pred_check_branch
      %34 = sbr.rel (0) target = $region9
    $region8: #{tpu_custom_call.1} parent=1 // pred_region
      %s36 = ssub.s32 64, 64
      %37 = vsyncadd [#allocation6], %s36
      %s39 = sshll.u32 [#allocation5], 4
      %s40 = int_to_ptr.vmem [resolvable:$true] %s39
      %42 = dma.hbm_to_vmem [thread:$0]  %s1, 64, %s40, [#allocation6]
    $region9: #{tpu_custom_call.1} parent=1 // pred_fallthru
      _
    // Predicated region
    $region10: #{tpu_custom_call.1} parent=1 // pred_check
      _
    $region11: #{tpu_custom_call.1} parent=1 // pred_check_branch
      %44 = sbr.rel (0) target = $region13
    $region12: #{tpu_custom_call.1} parent=1 // pred_region
      %s46 = ssub.s32 16, 16
      %47 = vsyncadd [#allocation6], %s46
      %s49 = sshll.u32 [#allocation7], 4
      %s50 = int_to_ptr.vmem [resolvable:$true] %s49
      %52 = dma.hbm_to_vmem [thread:$0]  %s2, 16, %s50, [#allocation6]
    $region13: #{tpu_custom_call.1} parent=1 // pred_fallthru
      _
    // Predicated region
    $region14: #{tpu_custom_call.1} parent=1 // pred_check
      _
    $region15: #{tpu_custom_call.1} parent=1 // pred_check_branch
      %54 = sbr.rel (0) target = $region17
    $region16: #{tpu_custom_call.1} parent=1 // pred_region
      %s56 = ssub.s32 1024, 1024
      %57 = vsyncadd [#allocation9], %s56
      %s58 = sshll.u32 [#allocation8], 4
      %s59 = int_to_ptr.vmem [resolvable:$true] %s58
      %64 = dma.hbm_to_vmem [thread:$0]  %s3, 1024, %s59, [#allocation9], 64, 64, 4
    $region17: #{tpu_custom_call.1} parent=1 // pred_fallthru
      _
    // Predicated region
    $region18: #{tpu_custom_call.1} parent=1 // pred_check
      _
    $region19: #{tpu_custom_call.1} parent=1 // pred_check_branch
      %66 = sbr.rel (0) target = $region21
    $region20: #{tpu_custom_call.1} parent=1 // pred_region
      %s68 = ssub.s32 16, 16
      %69 = vsyncadd [#allocation9], %s68
      %s71 = sshll.u32 [#allocation10], 4
      %s72 = int_to_ptr.vmem [resolvable:$true] %s71
      %74 = dma.hbm_to_vmem [thread:$0]  %s4, 16, %s72, [#allocation9]
    $region21: #{tpu_custom_call.1} parent=1 // pred_fallthru
      _
    // Predicated region
    $region22: #{tpu_custom_call.1} parent=1 // pred_check
      _
    $region23: #{tpu_custom_call.1} parent=1 // pred_check_branch
      %76 = sbr.rel (0) target = $region25
    $region24: #{tpu_custom_call.1} parent=1 // pred_region
      %s78 = ssub.s32 1024, 1024
      %79 = vsyncadd [#allocation12], %s78
      %s80 = sshll.u32 [#allocation11], 4
      %s81 = int_to_ptr.vmem [resolvable:$true] %s80
      %86 = dma.hbm_to_vmem [thread:$0]  %s5, 1024, %s81, [#allocation12], 64, 64, 4
    $region25: #{tpu_custom_call.1} parent=1 // pred_fallthru
      _
    // Predicated region
    $region26: #{tpu_custom_call.1} parent=1 // pred_check
      _
    $region27: #{tpu_custom_call.1} parent=1 // pred_check_branch
      %88 = sbr.rel (0) target = $region29
    $region28: #{tpu_custom_call.1} parent=1 // pred_region
      %s90 = ssub.s32 16, 16
      %91 = vsyncadd [#allocation12], %s90
      %s93 = sshll.u32 [#allocation13], 4
      %s94 = int_to_ptr.vmem [resolvable:$true] %s93
      %96 = dma.hbm_to_vmem [thread:$0]  %s6, 16, %s94, [#allocation12]
    $region29: #{tpu_custom_call.1} parent=1 // pred_fallthru
      _
    // Predicated region
    $region30: #{tpu_custom_call.1} parent=1 // pred_check
      _
    $region31: #{tpu_custom_call.1} parent=1 // pred_check_branch
      %98 = sbr.rel (0) target = $region33
    $region32: #{tpu_custom_call.1} parent=1 // pred_region
      %s100 = ssub.s32 1024, 1024
      %101 = vsyncadd [#allocation15], %s100
      %s102 = sshll.u32 [#allocation14], 4
      %s103 = int_to_ptr.vmem [resolvable:$true] %s102
      %108 = dma.hbm_to_vmem [thread:$0]  %s7, 1024, %s103, [#allocation15], 64, 64, 4
    $region33: #{tpu_custom_call.1} parent=1 // pred_fallthru
      _
    // Predicated region
    $region34: #{tpu_custom_call.1} parent=1 // pred_check
      _
    $region35: #{tpu_custom_call.1} parent=1 // pred_check_branch
      %110 = sbr.rel (0) target = $region37
    $region36: #{tpu_custom_call.1} parent=1 // pred_region
      %s112 = ssub.s32 16, 16
      %113 = vsyncadd [#allocation15], %s112
      %s115 = sshll.u32 [#allocation16], 4
      %s116 = int_to_ptr.vmem [resolvable:$true] %s115
      %118 = dma.hbm_to_vmem [thread:$0]  %s8, 16, %s116, [#allocation15]
    $region37: #{tpu_custom_call.1} parent=1 // pred_fallthru
      _
    // Predicated region
    $region38: #{tpu_custom_call.1} parent=1 // pred_check
      _
    $region39: #{tpu_custom_call.1} parent=1 // pred_check_branch
      %120 = sbr.rel (0) target = $region41
    $region40: #{tpu_custom_call.1} parent=1 // pred_region
      %s122 = ssub.s32 1024, 1024
      %123 = vsyncadd [#allocation18], %s122
      %s124 = sshll.u32 [#allocation17], 4
      %s125 = int_to_ptr.vmem [resolvable:$true] %s124
      %130 = dma.hbm_to_vmem [thread:$0]  %s9, 1024, %s125, [#allocation18], 64, 64, 4
    $region41: #{tpu_custom_call.1} parent=1 // pred_fallthru
      _
    // Predicated region
    $region42: #{tpu_custom_call.1} parent=1 // pred_check
      _
    $region43: #{tpu_custom_call.1} parent=1 // pred_check_branch
      %132 = sbr.rel (0) target = $region45
    $region44: #{tpu_custom_call.1} parent=1 // pred_region
      %s134 = ssub.s32 16, 16
      %135 = vsyncadd [#allocation18], %s134
      %s137 = sshll.u32 [#allocation19], 4
      %s138 = int_to_ptr.vmem [resolvable:$true] %s137
      %140 = dma.hbm_to_vmem [thread:$0]  %s10, 16, %s138, [#allocation18]
    $region45: #{tpu_custom_call.1} parent=1 // pred_fallthru
      _
    // Predicated region
    $region46: #{tpu_custom_call.1} parent=1 // pred_check
      _
    $region47: #{tpu_custom_call.1} parent=1 // pred_check_branch
      %142 = sbr.rel (0) target = $region49
    $region48: #{tpu_custom_call.1} parent=1 // pred_region
      %143 = dma.done [#allocation3], 128
    $region49: #{tpu_custom_call.1} parent=1 // pred_fallthru
      _
    // Predicated region
    $region50: #{tpu_custom_call.1} parent=1 // pred_check
      _
    $region51: #{tpu_custom_call.1} parent=1 // pred_check_branch
      %145 = sbr.rel (0) target = $region53
    $region52: #{tpu_custom_call.1} parent=1 // pred_region
      %146 = dma.done [#allocation6], 64
    $region53: #{tpu_custom_call.1} parent=1 // pred_fallthru
      _
    // Predicated region
    $region54: #{tpu_custom_call.1} parent=1 // pred_check
      _
    $region55: #{tpu_custom_call.1} parent=1 // pred_check_branch
      %148 = sbr.rel (0) target = $region57
    $region56: #{tpu_custom_call.1} parent=1 // pred_region
      %149 = dma.done [#allocation6], 16
    $region57: #{tpu_custom_call.1} parent=1 // pred_fallthru
      _
    // Predicated region
    $region58: #{tpu_custom_call.1} parent=1 // pred_check
      _
    $region59: #{tpu_custom_call.1} parent=1 // pred_check_branch
      %151 = sbr.rel (0) target = $region61
    $region60: #{tpu_custom_call.1} parent=1 // pred_region
      %152 = dma.done [#allocation9], 1024
    $region61: #{tpu_custom_call.1} parent=1 // pred_fallthru
      _
    // Predicated region
    $region62: #{tpu_custom_call.1} parent=1 // pred_check
      _
    $region63: #{tpu_custom_call.1} parent=1 // pred_check_branch
      %154 = sbr.rel (0) target = $region65
    $region64: #{tpu_custom_call.1} parent=1 // pred_region
      %155 = dma.done [#allocation9], 16
    $region65: #{tpu_custom_call.1} parent=1 // pred_fallthru
      _
    // Predicated region
    $region66: #{tpu_custom_call.1} parent=1 // pred_check
      _
    $region67: #{tpu_custom_call.1} parent=1 // pred_check_branch
      %157 = sbr.rel (0) target = $region69
    $region68: #{tpu_custom_call.1} parent=1 // pred_region
      %158 = dma.done [#allocation12], 1024
    $region69: #{tpu_custom_call.1} parent=1 // pred_fallthru
      _
    // Predicated region
    $region70: #{tpu_custom_call.1} parent=1 // pred_check
      _
    $region71: #{tpu_custom_call.1} parent=1 // pred_check_branch
      %160 = sbr.rel (0) target = $region73
    $region72: #{tpu_custom_call.1} parent=1 // pred_region
      %161 = dma.done [#allocation12], 16
    $region73: #{tpu_custom_call.1} parent=1 // pred_fallthru
      _
    // Predicated region
    $region74: #{tpu_custom_call.1} parent=1 // pred_check
      _
    $region75: #{tpu_custom_call.1} parent=1 // pred_check_branch
      %163 = sbr.rel (0) target = $region77
    $region76: #{tpu_custom_call.1} parent=1 // pred_region
      %164 = dma.done [#allocation15], 1024
    $region77: #{tpu_custom_call.1} parent=1 // pred_fallthru
      _
    // Predicated region
    $region78: #{tpu_custom_call.1} parent=1 // pred_check
      _
    $region79: #{tpu_custom_call.1} parent=1 // pred_check_branch
      %166 = sbr.rel (0) target = $region81
    $region80: #{tpu_custom_call.1} parent=1 // pred_region
      %167 = dma.done [#allocation15], 16
    $region81: #{tpu_custom_call.1} parent=1 // pred_fallthru
      _
    // Predicated region
    $region82: #{tpu_custom_call.1} parent=1 // pred_check
      _
    $region83: #{tpu_custom_call.1} parent=1 // pred_check_branch
      %169 = sbr.rel (0) target = $region85
    $region84: #{tpu_custom_call.1} parent=1 // pred_region
      %170 = dma.done [#allocation18], 1024
    $region85: #{tpu_custom_call.1} parent=1 // pred_fallthru
      _
    // Predicated region
    $region86: #{tpu_custom_call.1} parent=1 // pred_check
      _
    $region87: #{tpu_custom_call.1} parent=1 // pred_check_branch
      %172 = sbr.rel (0) target = $region89
    $region88: #{tpu_custom_call.1} parent=1 // pred_region
      %173 = dma.done [#allocation18], 16
    $region89: #{tpu_custom_call.1} parent=1 // pred_fallthru
      _
    %v175 = vld [vmem:[#allocation2] sm:$0xff]
    %v176 = vpack.c.bf16 %v175, %v175
    %v177 = vld [vmem:[#allocation5] sm:$0x7]
    %v178 = vld [vmem:[#allocation7] sm:$0x1]
    %v180 = vlaneseq
    %v181 = vshrl.u32 %v180, 7
    %v182 = vsub.s32 0, %v181
    %v183 = vrot.slane %v178, %v182
    %vm185 = vcmask 48128
    %v187 = vsel %vm185, %v176, 0
    %vm189 = vcmask 1042432
    %v191 = vsel %vm189, %v177, 0
    %193 = vmatprep.subr.bf16.mxu0 0
    %194 = vmatpush1.bf16.msra.mxu0 %v191
    %195 = vmatprep.subr.bf16.mxu0 0
    %196 = vmatpush1.bf16.msra.mxu0 0
    %197 = vmatprep.subr.bf16.mxu0 0
    %198 = vmatpush1.bf16.msra.mxu0 0
    %199 = vmatprep.subr.bf16.mxu0 0
    %200 = vmatpush1.bf16.msra.mxu0 0
    %201 = vmatprep.subr.bf16.mxu0 0
    %202 = vmatpush1.bf16.msra.mxu0 0
    %203 = vmatprep.subr.bf16.mxu0 0
    %204 = vmatpush1.bf16.msra.mxu0 0
    %205 = vmatprep.subr.bf16.mxu0 0
    %206 = vmatpush1.bf16.msra.mxu0 0
    %207 = vmatprep.subr.bf16.mxu0 0
    %208 = vmatpush1.bf16.msra.mxu0 0
    %209 = vmatprep.subr.bf16.mxu0 0
    %210 = vmatpush1.bf16.msra.mxu0 0
    %211 = vmatprep.subr.bf16.mxu0 0
    %212 = vmatpush1.bf16.msra.mxu0 0
    %213 = vmatprep.subr.bf16.mxu0 0
    %214 = vmatpush1.bf16.msra.mxu0 0
    %215 = vmatprep.subr.bf16.mxu0 0
    %216 = vmatpush1.bf16.msra.mxu0 0
    %217 = vmatprep.subr.bf16.mxu0 0
    %218 = vmatpush1.bf16.msra.mxu0 0
    %219 = vmatprep.subr.bf16.mxu0 0
    %220 = vmatpush1.bf16.msra.mxu0 0
    %221 = vmatprep.subr.bf16.mxu0 0
    %222 = vmatpush1.bf16.msra.mxu0 0
    %223 = vmatprep.subr.bf16.mxu0 0
    %224 = vmatpush1.bf16.msra.mxu0 0
    %225 = vmatprep.mubr.bf16.mxu0 0
    %226 = vmatmul.mubr.bf16.gmra.mrb[0].mxu0 %v187
    %v227 = vpop.f32.mrb[0].mxu0
    %v228 = vadd.f32 %v183, %v227
    %v229 = vpop.f32.mrb[0].mxu0
    %v230 = vpop.f32.mrb[0].mxu0
    %v231 = vpop.f32.mrb[0].mxu0
    %232 = vdwg.mxu0
    %v233 = vmax.f32 %v228, 0.0
    %v234 = vpack.c.bf16 %v233, %v233
    %v235 = vld [vmem:[#allocation8] sm:$0xf]
    %v236 = vld [vmem:[#allocation8 + $0x4] sm:$0xf]
    %v237 = vld [vmem:[#allocation8 + $0x8] sm:$0xf]
    %v238 = vld [vmem:[#allocation8 + $0xc] sm:$0xf]
    %v239 = vld [vmem:[#allocation8 + $0x10] sm:$0xf]
    %v240 = vld [vmem:[#allocation8 + $0x14] sm:$0xf]
    %v241 = vld [vmem:[#allocation8 + $0x18] sm:$0xf]
    %v242 = vld [vmem:[#allocation8 + $0x1c] sm:$0xf]
    %v243 = vld [vmem:[#allocation8 + $0x20] sm:$0xf]
    %v244 = vld [vmem:[#allocation8 + $0x24] sm:$0xf]
    %v245 = vld [vmem:[#allocation8 + $0x28] sm:$0xf]
    %v246 = vld [vmem:[#allocation8 + $0x2c] sm:$0xf]
    %v247 = vld [vmem:[#allocation8 + $0x30] sm:$0xf]
    %v248 = vld [vmem:[#allocation8 + $0x34] sm:$0xf]
    %v249 = vld [vmem:[#allocation8 + $0x38] sm:$0xf]
    %v250 = vld [vmem:[#allocation8 + $0x3c] sm:$0xf]
    %v251 = vld [vmem:[#allocation10] sm:$0x1]
    %v253 = vlaneseq
    %v254 = vshrl.u32 %v253, 7
    %v255 = vsub.s32 0, %v254
    %v256 = vrot.slane %v251, %v255
    %v274 = vunpack.c.l.b16 %v235
    %v275 = vunpack.c.l.b16 %v236
    %v276 = vunpack.c.l.b16 %v237
    %v277 = vunpack.c.l.b16 %v238
    %v278 = vunpack.c.l.b16 %v239
    %v279 = vunpack.c.l.b16 %v240
    %v280 = vunpack.c.l.b16 %v241
    %v281 = vunpack.c.l.b16 %v242
    %v282 = vunpack.c.l.b16 %v243
    %v283 = vunpack.c.l.b16 %v244
    %v284 = vunpack.c.l.b16 %v245
    %v285 = vunpack.c.l.b16 %v246
    %v286 = vunpack.c.l.b16 %v247
    %v287 = vunpack.c.l.b16 %v248
    %v288 = vunpack.c.l.b16 %v249
    %v289 = vunpack.c.l.b16 %v250
    %v290 = vpack.c.b16 %v275, %v274
    %v291 = vpack.c.b16 %v277, %v276
    %v292 = vpack.c.b16 %v279, %v278
    %v293 = vpack.c.b16 %v281, %v280
    %v294 = vpack.c.b16 %v283, %v282
    %v295 = vpack.c.b16 %v285, %v284
    %v296 = vpack.c.b16 %v287, %v286
    %v297 = vpack.c.b16 %v289, %v288
    %306 = vmatprep.subr.bf16.mxu0 0
    %307 = vmatpush1.bf16.msra.mxu0 %v290
    %308 = vmatprep.subr.bf16.mxu0 0
    %309 = vmatpush1.bf16.msra.mxu0 %v291
    %310 = vmatprep.subr.bf16.mxu0 0
    %311 = vmatpush1.bf16.msra.mxu0 %v292
    %312 = vmatprep.subr.bf16.mxu0 0
    %313 = vmatpush1.bf16.msra.mxu0 %v293
    %314 = vmatprep.subr.bf16.mxu0 0
    %315 = vmatpush1.bf16.msra.mxu0 %v294
    %316 = vmatprep.subr.bf16.mxu0 0
    %317 = vmatpush1.bf16.msra.mxu0 %v295
    %318 = vmatprep.subr.bf16.mxu0 0
    %319 = vmatpush1.bf16.msra.mxu0 %v296
    %320 = vmatprep.subr.bf16.mxu0 0
    %321 = vmatpush1.bf16.msra.mxu0 %v297
    %322 = vmatprep.subr.bf16.mxu0 0
    %323 = vmatpush1.bf16.msra.mxu0 0
    %324 = vmatprep.subr.bf16.mxu0 0
    %325 = vmatpush1.bf16.msra.mxu0 0
    %326 = vmatprep.subr.bf16.mxu0 0
    %327 = vmatpush1.bf16.msra.mxu0 0
    %328 = vmatprep.subr.bf16.mxu0 0
    %329 = vmatpush1.bf16.msra.mxu0 0
    %330 = vmatprep.subr.bf16.mxu0 0
    %331 = vmatpush1.bf16.msra.mxu0 0
    %332 = vmatprep.subr.bf16.mxu0 0
    %333 = vmatpush1.bf16.msra.mxu0 0
    %334 = vmatprep.subr.bf16.mxu0 0
    %335 = vmatpush1.bf16.msra.mxu0 0
    %336 = vmatprep.subr.bf16.mxu0 0
    %337 = vmatpush1.bf16.msra.mxu0 0
    %338 = vmatprep.mubr.bf16.mxu0 0
    %339 = vmatmul.mubr.bf16.gmra.mrb[0].mxu0 %v234
    %v340 = vpop.f32.mrb[0].mxu0
    %v341 = vadd.f32 %v256, %v340
    %v342 = vpop.f32.mrb[0].mxu0
    %v343 = vpop.f32.mrb[0].mxu0
    %v344 = vpop.f32.mrb[0].mxu0
    %345 = vdwg.mxu0
    %v346 = vmax.f32 %v341, 0.0
    %v347 = vpack.c.bf16 %v346, %v346
    %v348 = vld [vmem:[#allocation11] sm:$0xf]
    %v349 = vld [vmem:[#allocation11 + $0x4] sm:$0xf]
    %v350 = vld [vmem:[#allocation11 + $0x8] sm:$0xf]
    %v351 = vld [vmem:[#allocation11 + $0xc] sm:$0xf]
    %v352 = vld [vmem:[#allocation11 + $0x10] sm:$0xf]
    %v353 = vld [vmem:[#allocation11 + $0x14] sm:$0xf]
    %v354 = vld [vmem:[#allocation11 + $0x18] sm:$0xf]
    %v355 = vld [vmem:[#allocation11 + $0x1c] sm:$0xf]
    %v356 = vld [vmem:[#allocation11 + $0x20] sm:$0xf]
    %v357 = vld [vmem:[#allocation11 + $0x24] sm:$0xf]
    %v358 = vld [vmem:[#allocation11 + $0x28] sm:$0xf]
    %v359 = vld [vmem:[#allocation11 + $0x2c] sm:$0xf]
    %v360 = vld [vmem:[#allocation11 + $0x30] sm:$0xf]
    %v361 = vld [vmem:[#allocation11 + $0x34] sm:$0xf]
    %v362 = vld [vmem:[#allocation11 + $0x38] sm:$0xf]
    %v363 = vld [vmem:[#allocation11 + $0x3c] sm:$0xf]
    %v364 = vld [vmem:[#allocation13] sm:$0x1]
    %v366 = vlaneseq
    %v367 = vshrl.u32 %v366, 7
    %v368 = vsub.s32 0, %v367
    %v369 = vrot.slane %v364, %v368
    %v387 = vunpack.c.l.b16 %v348
    %v388 = vunpack.c.l.b16 %v349
    %v389 = vunpack.c.l.b16 %v350
    %v390 = vunpack.c.l.b16 %v351
    %v391 = vunpack.c.l.b16 %v352
    %v392 = vunpack.c.l.b16 %v353
    %v393 = vunpack.c.l.b16 %v354
    %v394 = vunpack.c.l.b16 %v355
    %v395 = vunpack.c.l.b16 %v356
    %v396 = vunpack.c.l.b16 %v357
    %v397 = vunpack.c.l.b16 %v358
    %v398 = vunpack.c.l.b16 %v359
    %v399 = vunpack.c.l.b16 %v360
    %v400 = vunpack.c.l.b16 %v361
    %v401 = vunpack.c.l.b16 %v362
    %v402 = vunpack.c.l.b16 %v363
    %v403 = vpack.c.b16 %v388, %v387
    %v404 = vpack.c.b16 %v390, %v389
    %v405 = vpack.c.b16 %v392, %v391
    %v406 = vpack.c.b16 %v394, %v393
    %v407 = vpack.c.b16 %v396, %v395
    %v408 = vpack.c.b16 %v398, %v397
    %v409 = vpack.c.b16 %v400, %v399
    %v410 = vpack.c.b16 %v402, %v401
    %419 = vmatprep.subr.bf16.mxu0 0
    %420 = vmatpush1.bf16.msra.mxu0 %v403
    %421 = vmatprep.subr.bf16.mxu0 0
    %422 = vmatpush1.bf16.msra.mxu0 %v404
    %423 = vmatprep.subr.bf16.mxu0 0
    %424 = vmatpush1.bf16.msra.mxu0 %v405
    %425 = vmatprep.subr.bf16.mxu0 0
    %426 = vmatpush1.bf16.msra.mxu0 %v406
    %427 = vmatprep.subr.bf16.mxu0 0
    %428 = vmatpush1.bf16.msra.mxu0 %v407
    %429 = vmatprep.subr.bf16.mxu0 0
    %430 = vmatpush1.bf16.msra.mxu0 %v408
    %431 = vmatprep.subr.bf16.mxu0 0
    %432 = vmatpush1.bf16.msra.mxu0 %v409
    %433 = vmatprep.subr.bf16.mxu0 0
    %434 = vmatpush1.bf16.msra.mxu0 %v410
    %435 = vmatprep.subr.bf16.mxu0 0
    %436 = vmatpush1.bf16.msra.mxu0 0
    %437 = vmatprep.subr.bf16.mxu0 0
    %438 = vmatpush1.bf16.msra.mxu0 0
    %439 = vmatprep.subr.bf16.mxu0 0
    %440 = vmatpush1.bf16.msra.mxu0 0
    %441 = vmatprep.subr.bf16.mxu0 0
    %442 = vmatpush1.bf16.msra.mxu0 0
    %443 = vmatprep.subr.bf16.mxu0 0
    %444 = vmatpush1.bf16.msra.mxu0 0
    %445 = vmatprep.subr.bf16.mxu0 0
    %446 = vmatpush1.bf16.msra.mxu0 0
    %447 = vmatprep.subr.bf16.mxu0 0
    %448 = vmatpush1.bf16.msra.mxu0 0
    %449 = vmatprep.subr.bf16.mxu0 0
    %450 = vmatpush1.bf16.msra.mxu0 0
    %451 = vmatprep.mubr.bf16.mxu0 0
    %452 = vmatmul.mubr.bf16.gmra.mrb[0].mxu0 %v347
    %v453 = vpop.f32.mrb[0].mxu0
    %v454 = vadd.f32 %v369, %v453
    %v455 = vpop.f32.mrb[0].mxu0
    %v456 = vpop.f32.mrb[0].mxu0
    %v457 = vpop.f32.mrb[0].mxu0
    %458 = vdwg.mxu0
    %v459 = vmax.f32 %v454, 0.0
    %v460 = vpack.c.bf16 %v459, %v459
    %v461 = vld [vmem:[#allocation14] sm:$0xf]
    %v462 = vld [vmem:[#allocation14 + $0x4] sm:$0xf]
    %v463 = vld [vmem:[#allocation14 + $0x8] sm:$0xf]
    %v464 = vld [vmem:[#allocation14 + $0xc] sm:$0xf]
    %v465 = vld [vmem:[#allocation14 + $0x10] sm:$0xf]
    %v466 = vld [vmem:[#allocation14 + $0x14] sm:$0xf]
    %v467 = vld [vmem:[#allocation14 + $0x18] sm:$0xf]
    %v468 = vld [vmem:[#allocation14 + $0x1c] sm:$0xf]
    %v469 = vld [vmem:[#allocation14 + $0x20] sm:$0xf]
    %v470 = vld [vmem:[#allocation14 + $0x24] sm:$0xf]
    %v471 = vld [vmem:[#allocation14 + $0x28] sm:$0xf]
    %v472 = vld [vmem:[#allocation14 + $0x2c] sm:$0xf]
    %v473 = vld [vmem:[#allocation14 + $0x30] sm:$0xf]
    %v474 = vld [vmem:[#allocation14 + $0x34] sm:$0xf]
    %v475 = vld [vmem:[#allocation14 + $0x38] sm:$0xf]
    %v476 = vld [vmem:[#allocation14 + $0x3c] sm:$0xf]
    %v477 = vld [vmem:[#allocation16] sm:$0x1]
    %v479 = vlaneseq
    %v480 = vshrl.u32 %v479, 7
    %v481 = vsub.s32 0, %v480
    %v482 = vrot.slane %v477, %v481
    %v500 = vunpack.c.l.b16 %v461
    %v501 = vunpack.c.l.b16 %v462
    %v502 = vunpack.c.l.b16 %v463
    %v503 = vunpack.c.l.b16 %v464
    %v504 = vunpack.c.l.b16 %v465
    %v505 = vunpack.c.l.b16 %v466
    %v506 = vunpack.c.l.b16 %v467
    %v507 = vunpack.c.l.b16 %v468
    %v508 = vunpack.c.l.b16 %v469
    %v509 = vunpack.c.l.b16 %v470
    %v510 = vunpack.c.l.b16 %v471
    %v511 = vunpack.c.l.b16 %v472
    %v512 = vunpack.c.l.b16 %v473
    %v513 = vunpack.c.l.b16 %v474
    %v514 = vunpack.c.l.b16 %v475
    %v515 = vunpack.c.l.b16 %v476
    %v516 = vpack.c.b16 %v501, %v500
    %v517 = vpack.c.b16 %v503, %v502
    %v518 = vpack.c.b16 %v505, %v504
    %v519 = vpack.c.b16 %v507, %v506
    %v520 = vpack.c.b16 %v509, %v508
    %v521 = vpack.c.b16 %v511, %v510
    %v522 = vpack.c.b16 %v513, %v512
    %v523 = vpack.c.b16 %v515, %v514
    %532 = vmatprep.subr.bf16.mxu0 0
    %533 = vmatpush1.bf16.msra.mxu0 %v516
    %534 = vmatprep.subr.bf16.mxu0 0
    %535 = vmatpush1.bf16.msra.mxu0 %v517
    %536 = vmatprep.subr.bf16.mxu0 0
    %537 = vmatpush1.bf16.msra.mxu0 %v518
    %538 = vmatprep.subr.bf16.mxu0 0
    %539 = vmatpush1.bf16.msra.mxu0 %v519
    %540 = vmatprep.subr.bf16.mxu0 0
    %541 = vmatpush1.bf16.msra.mxu0 %v520
    %542 = vmatprep.subr.bf16.mxu0 0
    %543 = vmatpush1.bf16.msra.mxu0 %v521
    %544 = vmatprep.subr.bf16.mxu0 0
    %545 = vmatpush1.bf16.msra.mxu0 %v522
    %546 = vmatprep.subr.bf16.mxu0 0
    %547 = vmatpush1.bf16.msra.mxu0 %v523
    %548 = vmatprep.subr.bf16.mxu0 0
    %549 = vmatpush1.bf16.msra.mxu0 0
    %550 = vmatprep.subr.bf16.mxu0 0
    %551 = vmatpush1.bf16.msra.mxu0 0
    %552 = vmatprep.subr.bf16.mxu0 0
    %553 = vmatpush1.bf16.msra.mxu0 0
    %554 = vmatprep.subr.bf16.mxu0 0
    %555 = vmatpush1.bf16.msra.mxu0 0
    %556 = vmatprep.subr.bf16.mxu0 0
    %557 = vmatpush1.bf16.msra.mxu0 0
    %558 = vmatprep.subr.bf16.mxu0 0
    %559 = vmatpush1.bf16.msra.mxu0 0
    %560 = vmatprep.subr.bf16.mxu0 0
    %561 = vmatpush1.bf16.msra.mxu0 0
    %562 = vmatprep.subr.bf16.mxu0 0
    %563 = vmatpush1.bf16.msra.mxu0 0
    %564 = vmatprep.mubr.bf16.mxu0 0
    %565 = vmatmul.mubr.bf16.gmra.mrb[0].mxu0 %v460
    %v566 = vpop.f32.mrb[0].mxu0
    %v567 = vadd.f32 %v482, %v566
    %v568 = vpop.f32.mrb[0].mxu0
    %v569 = vpop.f32.mrb[0].mxu0
    %v570 = vpop.f32.mrb[0].mxu0
    %571 = vdwg.mxu0
    %v572 = vmax.f32 %v567, 0.0
    %v573 = vpack.c.bf16 %v572, %v572
    %v574 = vld [vmem:[#allocation17] sm:$0xf]
    %v575 = vld [vmem:[#allocation17 + $0x4] sm:$0xf]
    %v576 = vld [vmem:[#allocation17 + $0x8] sm:$0xf]
    %v577 = vld [vmem:[#allocation17 + $0xc] sm:$0xf]
    %v578 = vld [vmem:[#allocation17 + $0x10] sm:$0xf]
    %v579 = vld [vmem:[#allocation17 + $0x14] sm:$0xf]
    %v580 = vld [vmem:[#allocation17 + $0x18] sm:$0xf]
    %v581 = vld [vmem:[#allocation17 + $0x1c] sm:$0xf]
    %v582 = vld [vmem:[#allocation17 + $0x20] sm:$0xf]
    %v583 = vld [vmem:[#allocation17 + $0x24] sm:$0xf]
    %v584 = vld [vmem:[#allocation17 + $0x28] sm:$0xf]
    %v585 = vld [vmem:[#allocation17 + $0x2c] sm:$0xf]
    %v586 = vld [vmem:[#allocation17 + $0x30] sm:$0xf]
    %v587 = vld [vmem:[#allocation17 + $0x34] sm:$0xf]
    %v588 = vld [vmem:[#allocation17 + $0x38] sm:$0xf]
    %v589 = vld [vmem:[#allocation17 + $0x3c] sm:$0xf]
    %v590 = vld [vmem:[#allocation19] sm:$0x1]
    %v592 = vlaneseq
    %v593 = vshrl.u32 %v592, 7
    %v594 = vsub.s32 0, %v593
    %v595 = vrot.slane %v590, %v594
    %v613 = vunpack.c.l.b16 %v574
    %v614 = vunpack.c.l.b16 %v575
    %v615 = vunpack.c.l.b16 %v576
    %v616 = vunpack.c.l.b16 %v577
    %v617 = vunpack.c.l.b16 %v578
    %v618 = vunpack.c.l.b16 %v579
    %v619 = vunpack.c.l.b16 %v580
    %v620 = vunpack.c.l.b16 %v581
    %v621 = vunpack.c.l.b16 %v582
    %v622 = vunpack.c.l.b16 %v583
    %v623 = vunpack.c.l.b16 %v584
    %v624 = vunpack.c.l.b16 %v585
    %v625 = vunpack.c.l.b16 %v586
    %v626 = vunpack.c.l.b16 %v587
    %v627 = vunpack.c.l.b16 %v588
    %v628 = vunpack.c.l.b16 %v589
    %v629 = vpack.c.b16 %v614, %v613
    %v630 = vpack.c.b16 %v616, %v615
    %v631 = vpack.c.b16 %v618, %v617
    %v632 = vpack.c.b16 %v620, %v619
    %v633 = vpack.c.b16 %v622, %v621
    %v634 = vpack.c.b16 %v624, %v623
    %v635 = vpack.c.b16 %v626, %v625
    %v636 = vpack.c.b16 %v628, %v627
    %645 = vmatprep.subr.bf16.mxu0 0
    %646 = vmatpush1.bf16.msra.mxu0 %v629
    %647 = vmatprep.subr.bf16.mxu0 0
    %648 = vmatpush1.bf16.msra.mxu0 %v630
    %649 = vmatprep.subr.bf16.mxu0 0
    %650 = vmatpush1.bf16.msra.mxu0 %v631
    %651 = vmatprep.subr.bf16.mxu0 0
    %652 = vmatpush1.bf16.msra.mxu0 %v632
    %653 = vmatprep.subr.bf16.mxu0 0
    %654 = vmatpush1.bf16.msra.mxu0 %v633
    %655 = vmatprep.subr.bf16.mxu0 0
    %656 = vmatpush1.bf16.msra.mxu0 %v634
    %657 = vmatprep.subr.bf16.mxu0 0
    %658 = vmatpush1.bf16.msra.mxu0 %v635
    %659 = vmatprep.subr.bf16.mxu0 0
    %660 = vmatpush1.bf16.msra.mxu0 %v636
    %661 = vmatprep.subr.bf16.mxu0 0
    %662 = vmatpush1.bf16.msra.mxu0 0
    %663 = vmatprep.subr.bf16.mxu0 0
    %664 = vmatpush1.bf16.msra.mxu0 0
    %665 = vmatprep.subr.bf16.mxu0 0
    %666 = vmatpush1.bf16.msra.mxu0 0
    %667 = vmatprep.subr.bf16.mxu0 0
    %668 = vmatpush1.bf16.msra.mxu0 0
    %669 = vmatprep.subr.bf16.mxu0 0
    %670 = vmatpush1.bf16.msra.mxu0 0
    %671 = vmatprep.subr.bf16.mxu0 0
    %672 = vmatpush1.bf16.msra.mxu0 0
    %673 = vmatprep.subr.bf16.mxu0 0
    %674 = vmatpush1.bf16.msra.mxu0 0
    %675 = vmatprep.subr.bf16.mxu0 0
    %676 = vmatpush1.bf16.msra.mxu0 0
    %677 = vmatprep.mubr.bf16.mxu0 0
    %678 = vmatmul.mubr.bf16.gmra.mrb[0].mxu0 %v573
    %v679 = vpop.f32.mrb[0].mxu0
    %v680 = vadd.f32 %v595, %v679
    %v681 = vpop.f32.mrb[0].mxu0
    %v682 = vpop.f32.mrb[0].mxu0
    %v683 = vpop.f32.mrb[0].mxu0
    %684 = vdwg.mxu0
    %v685 = vtanh.pop %v680
    %vm686 = vcmask 15360
    %687 = vst.msk [vmem:[#allocation20] sm:$0xff] %vm686, %v685
    // Predicated region
    $region90: #{tpu_custom_call.1} parent=1 // pred_check
      _
    $region91: #{tpu_custom_call.1} parent=1 // pred_check_branch
      %689 = sbr.rel (0) target = $region93
    $region92: #{tpu_custom_call.1} parent=1 // pred_region
      %s691 = ssub.s32 128, 128
      %692 = vsyncadd [#allocation4], %s691
      %s694 = sshll.u32 [#allocation20], 4
      %s695 = int_to_ptr.vmem [resolvable:$true] %s694
      %697 = dma.vmem_to_hbm [thread:$0]  %s695, 128, %s11, [#allocation4]
    $region93: #{tpu_custom_call.1} parent=1 // pred_fallthru
      _
    // Predicated region
    $region94: #{tpu_custom_call.1} parent=1 // pred_check
      _
    $region95: #{tpu_custom_call.1} parent=1 // pred_check_branch
      %699 = sbr.rel (0) target = $region97
    $region96: #{tpu_custom_call.1} parent=1 // pred_region
      %700 = dma.done [#allocation4], 128
    $region97: #{tpu_custom_call.1} parent=1 // pred_fallthru
      _
    %701 = vsyncpa [#allocation3], 1
    %702 = vsyncpa [#allocation6], 1
    %703 = vsyncpa [#allocation9], 1
    %704 = vsyncpa [#allocation12], 1
    %705 = vsyncpa [#allocation15], 1
    %706 = vsyncpa [#allocation18], 1
    %707 = vsyncpa [#allocation4], 1

// kernel: tpu_custom_call.1
$region0: #{tpu_custom_call.1}
  #allocation0 [shape = 'u32[]', space=smem, size = 0x4, offset = 0x4, fixed_abs, tag = 'smem constant byte address 0x4 - core index']
  #allocation1 [shape = 'u32[144,128]{1,0:T(1,128)}', space=vmem, size = 0x12000, scoped, tag = 'internal scratch']
  %s0 = inlined_call_operand.hbm [shape: f32[8,6], index: 0, kind: input, shape index: {}]
  %s1 = inlined_call_operand.hbm [shape: bf16[6,128], index: 1, kind: input, shape index: {}]
  %s2 = inlined_call_operand.hbm [shape: f32[1,128], index: 2, kind: input, shape index: {}]
  %s3 = inlined_call_operand.hbm [shape: bf16[128,128], index: 3, kind: input, shape index: {}]
  %s4 = inlined_call_operand.hbm [shape: f32[1,128], index: 4, kind: input, shape index: {}]
  %s5 = inlined_call_operand.hbm [shape: bf16[128,128], index: 5, kind: input, shape index: {}]
  %s6 = inlined_call_operand.hbm [shape: f32[1,128], index: 6, kind: input, shape index: {}]
  %s7 = inlined_call_operand.hbm [shape: bf16[128,128], index: 7, kind: input, shape index: {}]
  %s8 = inlined_call_operand.hbm [shape: f32[1,128], index: 8, kind: input, shape index: {}]
  %s9 = inlined_call_operand.hbm [shape: bf16[128,128], index: 9, kind: input, shape index: {}]
  %s10 = inlined_call_operand.hbm [shape: f32[1,128], index: 10, kind: input, shape index: {}]
  %s11 = inlined_call_operand.hbm [shape: f32[8,2], index: 11, kind: output, shape index: {}]
  %s12 = sld [smem:[#allocation0]]
  $region98: #{tpu_custom_call.1} parent=0
    _
  %s14 = ssub.s32 1, %s12
  %s15 = scalar_select 0, %s14, %s12
  $region1: #{tpu_custom_call.1} parent=0
    #allocation2 [shape = 'u8[4096]{0}', space=vmem, size = 0x1000, scoped, tag = 'input window, operand 0, single buffered']
    #allocation3 [shape = 's32[1]{0}', space=sflag, size = 0x4, scoped, tag = 'scoped memory for tpu_custom_call.1']
    #allocation4 [shape = 's32[1]{0}', space=sflag, size = 0x4, scoped, tag = 'scoped memory for tpu_custom_call.1']
    #allocation5 [shape = 'u8[2048]{0}', space=vmem, size = 0x800, scoped, tag = 'input window, operand 1, single buffered']
    #allocation6 [shape = 's32[1]{0}', space=sflag, size = 0x4, scoped, tag = 'scoped memory for tpu_custom_call.1']
    #allocation7 [shape = 'u8[512]{0}', space=vmem, size = 0x400, scoped, tag = 'input window, operand 2, single buffered']
    #allocation8 [shape = 'u8[32768]{0}', space=vmem, size = 0x8000, scoped, tag = 'input window, operand 3, single buffered']
    #allocation9 [shape = 's32[1]{0}', space=sflag, size = 0x4, scoped, tag = 'scoped memory for tpu_custom_call.1']
    #allocation10 [shape = 'u8[512]{0}', space=vmem, size = 0x400, scoped, tag = 'input window, operand 4, single buffered']
    #allocation11 [shape = 'u8[32768]{0}', space=vmem, size = 0x8000, scoped, tag = 'input window, operand 5, single buffered']
    #allocation12 [shape = 's32[1]{0}', space=sflag, size = 0x4, scoped, tag = 'scoped memory for tpu_custom_call.1']
    #allocation13 [shape = 'u8[512]{0}', space=vmem, size = 0x400, scoped, tag = 'input window, operand 6, single buffered']
    #allocation14 [shape = 'u8[32768]{0}', space=vmem, size = 0x8000, scoped, tag = 'input window, operand 7, single buffered']
    #allocation15 [shape = 's32[1]{0}', space=sflag, size = 0x4, scoped, tag = 'scoped memory for tpu_custom_call.1']
    #allocation16 [shape = 'u8[512]{0}', space=vmem, size = 0x400, scoped, tag = 'input window, operand 8, single buffered']
    #allocation17 [shape = 'u8[32768]{0}', space=vmem, size = 0x8000, scoped, tag = 'input window, operand 9, single buffered']
    #allocation18 [shape = 's32[1]{0}', space=sflag, size = 0x4, scoped, tag = 'scoped memory for tpu_custom_call.1']
    #allocation19 [shape = 'u8[512]{0}', space=vmem, size = 0x400, scoped, tag = 'input window, operand 10, single buffered']
    #allocation20 [shape = 'u8[4096]{0}', space=vmem, size = 0x1000, scoped, tag = 'output window, operand 0, single buffered']
    %16 = vsyncpa [#allocation3], 0
    %17 = vsyncpa [#allocation6], 0
    %18 = vsyncpa [#allocation9], 0
    %19 = vsyncpa [#allocation12], 0
    %20 = vsyncpa [#allocation15], 0
    %21 = vsyncpa [#allocation18], 0
    %22 = vsyncpa [#allocation4], 0
    // Predicated region
    $region2: #{tpu_custom_call.1} parent=1 // pred_check
      _
    $region3: #{tpu_custom_call.1} parent=1 // pred_check_branch
      %24 = sbr.rel (0) target = $region5
    $region4: #{tpu_custom_call.1} parent=1 // pred_region
      %s26 = ssub.s32 128, 128
      %27 = vsyncadd [#allocation3], %s26
      %s29 = sshll.u32 [#allocation2], 4
      %s30 = int_to_ptr.vmem [resolvable:$true] %s29
      %32 = dma.hbm_to_vmem [thread:$0]  %s0, 128, %s30, [#allocation3]
    $region5: #{tpu_custom_call.1} parent=1 // pred_fallthru
      _
    // Predicated region
    $region6: #{tpu_custom_call.1} parent=1 // pred_check
      _
    $region7: #{tpu_custom_call.1} parent=1 // pred_check_branch
      %34 = sbr.rel (0) target = $region9
    $region8: #{tpu_custom_call.1} parent=1 // pred_region
      %s36 = ssub.s32 64, 64
      %37 = vsyncadd [#allocation6], %s36
      %s39 = sshll.u32 [#allocation5], 4
      %s40 = int_to_ptr.vmem [resolvable:$true] %s39
      %42 = dma.hbm_to_vmem [thread:$0]  %s1, 64, %s40, [#allocation6]
    $region9: #{tpu_custom_call.1} parent=1 // pred_fallthru
      _
    // Predicated region
    $region10: #{tpu_custom_call.1} parent=1 // pred_check
      _
    $region11: #{tpu_custom_call.1} parent=1 // pred_check_branch
      %44 = sbr.rel (0) target = $region13
    $region12: #{tpu_custom_call.1} parent=1 // pred_region
      %s46 = ssub.s32 16, 16
      %47 = vsyncadd [#allocation6], %s46
      %s49 = sshll.u32 [#allocation7], 4
      %s50 = int_to_ptr.vmem [resolvable:$true] %s49
      %52 = dma.hbm_to_vmem [thread:$0]  %s2, 16, %s50, [#allocation6]
    $region13: #{tpu_custom_call.1} parent=1 // pred_fallthru
      _
    // Predicated region
    $region14: #{tpu_custom_call.1} parent=1 // pred_check
      _
    $region15: #{tpu_custom_call.1} parent=1 // pred_check_branch
      %54 = sbr.rel (0) target = $region17
    $region16: #{tpu_custom_call.1} parent=1 // pred_region
      %s56 = ssub.s32 1024, 1024
      %57 = vsyncadd [#allocation9], %s56
      %s58 = sshll.u32 [#allocation8], 4
      %s59 = int_to_ptr.vmem [resolvable:$true] %s58
      %64 = dma.hbm_to_vmem [thread:$0]  %s3, 1024, %s59, [#allocation9], 64, 64, 4
    $region17: #{tpu_custom_call.1} parent=1 // pred_fallthru
      _
    // Predicated region
    $region18: #{tpu_custom_call.1} parent=1 // pred_check
      _
    $region19: #{tpu_custom_call.1} parent=1 // pred_check_branch
      %66 = sbr.rel (0) target = $region21
    $region20: #{tpu_custom_call.1} parent=1 // pred_region
      %s68 = ssub.s32 16, 16
      %69 = vsyncadd [#allocation9], %s68
      %s71 = sshll.u32 [#allocation10], 4
      %s72 = int_to_ptr.vmem [resolvable:$true] %s71
      %74 = dma.hbm_to_vmem [thread:$0]  %s4, 16, %s72, [#allocation9]
    $region21: #{tpu_custom_call.1} parent=1 // pred_fallthru
      _
    // Predicated region
    $region22: #{tpu_custom_call.1} parent=1 // pred_check
      _
    $region23: #{tpu_custom_call.1} parent=1 // pred_check_branch
      %76 = sbr.rel (0) target = $region25
    $region24: #{tpu_custom_call.1} parent=1 // pred_region
      %s78 = ssub.s32 1024, 1024
      %79 = vsyncadd [#allocation12], %s78
      %s80 = sshll.u32 [#allocation11], 4
      %s81 = int_to_ptr.vmem [resolvable:$true] %s80
      %86 = dma.hbm_to_vmem [thread:$0]  %s5, 1024, %s81, [#allocation12], 64, 64, 4
    $region25: #{tpu_custom_call.1} parent=1 // pred_fallthru
      _
    // Predicated region
    $region26: #{tpu_custom_call.1} parent=1 // pred_check
      _
    $region27: #{tpu_custom_call.1} parent=1 // pred_check_branch
      %88 = sbr.rel (0) target = $region29
    $region28: #{tpu_custom_call.1} parent=1 // pred_region
      %s90 = ssub.s32 16, 16
      %91 = vsyncadd [#allocation12], %s90
      %s93 = sshll.u32 [#allocation13], 4
      %s94 = int_to_ptr.vmem [resolvable:$true] %s93
      %96 = dma.hbm_to_vmem [thread:$0]  %s6, 16, %s94, [#allocation12]
    $region29: #{tpu_custom_call.1} parent=1 // pred_fallthru
      _
    // Predicated region
    $region30: #{tpu_custom_call.1} parent=1 // pred_check
      _
    $region31: #{tpu_custom_call.1} parent=1 // pred_check_branch
      %98 = sbr.rel (0) target = $region33
    $region32: #{tpu_custom_call.1} parent=1 // pred_region
      %s100 = ssub.s32 1024, 1024
      %101 = vsyncadd [#allocation15], %s100
      %s102 = sshll.u32 [#allocation14], 4
      %s103 = int_to_ptr.vmem [resolvable:$true] %s102
      %108 = dma.hbm_to_vmem [thread:$0]  %s7, 1024, %s103, [#allocation15], 64, 64, 4
    $region33: #{tpu_custom_call.1} parent=1 // pred_fallthru
      _
    // Predicated region
    $region34: #{tpu_custom_call.1} parent=1 // pred_check
      _
    $region35: #{tpu_custom_call.1} parent=1 // pred_check_branch
      %110 = sbr.rel (0) target = $region37
    $region36: #{tpu_custom_call.1} parent=1 // pred_region
      %s112 = ssub.s32 16, 16
      %113 = vsyncadd [#allocation15], %s112
      %s115 = sshll.u32 [#allocation16], 4
      %s116 = int_to_ptr.vmem [resolvable:$true] %s115
      %118 = dma.hbm_to_vmem [thread:$0]  %s8, 16, %s116, [#allocation15]
    $region37: #{tpu_custom_call.1} parent=1 // pred_fallthru
      _
    // Predicated region
    $region38: #{tpu_custom_call.1} parent=1 // pred_check
      _
    $region39: #{tpu_custom_call.1} parent=1 // pred_check_branch
      %120 = sbr.rel (0) target = $region41
    $region40: #{tpu_custom_call.1} parent=1 // pred_region
      %s122 = ssub.s32 1024, 1024
      %123 = vsyncadd [#allocation18], %s122
      %s124 = sshll.u32 [#allocation17], 4
      %s125 = int_to_ptr.vmem [resolvable:$true] %s124
      %130 = dma.hbm_to_vmem [thread:$0]  %s9, 1024, %s125, [#allocation18], 64, 64, 4
    $region41: #{tpu_custom_call.1} parent=1 // pred_fallthru
      _
    // Predicated region
    $region42: #{tpu_custom_call.1} parent=1 // pred_check
      _
    $region43: #{tpu_custom_call.1} parent=1 // pred_check_branch
      %132 = sbr.rel (0) target = $region45
    $region44: #{tpu_custom_call.1} parent=1 // pred_region
      %s134 = ssub.s32 16, 16
      %135 = vsyncadd [#allocation18], %s134
      %s137 = sshll.u32 [#allocation19], 4
      %s138 = int_to_ptr.vmem [resolvable:$true] %s137
      %140 = dma.hbm_to_vmem [thread:$0]  %s10, 16, %s138, [#allocation18]
    $region45: #{tpu_custom_call.1} parent=1 // pred_fallthru
      _
    // Predicated region
    $region46: #{tpu_custom_call.1} parent=1 // pred_check
      _
    $region47: #{tpu_custom_call.1} parent=1 // pred_check_branch
      %142 = sbr.rel (0) target = $region49
    $region48: #{tpu_custom_call.1} parent=1 // pred_region
      %143 = dma.done [#allocation3], 128
    $region49: #{tpu_custom_call.1} parent=1 // pred_fallthru
      _
    // Predicated region
    $region50: #{tpu_custom_call.1} parent=1 // pred_check
      _
    $region51: #{tpu_custom_call.1} parent=1 // pred_check_branch
      %145 = sbr.rel (0) target = $region53
    $region52: #{tpu_custom_call.1} parent=1 // pred_region
      %146 = dma.done [#allocation6], 64
    $region53: #{tpu_custom_call.1} parent=1 // pred_fallthru
      _
    // Predicated region
    $region54: #{tpu_custom_call.1} parent=1 // pred_check
      _
    $region55: #{tpu_custom_call.1} parent=1 // pred_check_branch
      %148 = sbr.rel (0) target = $region57
    $region56: #{tpu_custom_call.1} parent=1 // pred_region
      %149 = dma.done [#allocation6], 16
    $region57: #{tpu_custom_call.1} parent=1 // pred_fallthru
      _
    // Predicated region
    $region58: #{tpu_custom_call.1} parent=1 // pred_check
      _
    $region59: #{tpu_custom_call.1} parent=1 // pred_check_branch
      %151 = sbr.rel (0) target = $region61
    $region60: #{tpu_custom_call.1} parent=1 // pred_region
      %152 = dma.done [#allocation9], 1024
    $region61: #{tpu_custom_call.1} parent=1 // pred_fallthru
      _
    // Predicated region
    $region62: #{tpu_custom_call.1} parent=1 // pred_check
      _
    $region63: #{tpu_custom_call.1} parent=1 // pred_check_branch
      %154 = sbr.rel (0) target = $region65
    $region64: #{tpu_custom_call.1} parent=1 // pred_region
      %155 = dma.done [#allocation9], 16
    $region65: #{tpu_custom_call.1} parent=1 // pred_fallthru
      _
    // Predicated region
    $region66: #{tpu_custom_call.1} parent=1 // pred_check
      _
    $region67: #{tpu_custom_call.1} parent=1 // pred_check_branch
      %157 = sbr.rel (0) target = $region69
    $region68: #{tpu_custom_call.1} parent=1 // pred_region
      %158 = dma.done [#allocation12], 1024
    $region69: #{tpu_custom_call.1} parent=1 // pred_fallthru
      _
    // Predicated region
    $region70: #{tpu_custom_call.1} parent=1 // pred_check
      _
    $region71: #{tpu_custom_call.1} parent=1 // pred_check_branch
      %160 = sbr.rel (0) target = $region73
    $region72: #{tpu_custom_call.1} parent=1 // pred_region
      %161 = dma.done [#allocation12], 16
    $region73: #{tpu_custom_call.1} parent=1 // pred_fallthru
      _
    // Predicated region
    $region74: #{tpu_custom_call.1} parent=1 // pred_check
      _
    $region75: #{tpu_custom_call.1} parent=1 // pred_check_branch
      %163 = sbr.rel (0) target = $region77
    $region76: #{tpu_custom_call.1} parent=1 // pred_region
      %164 = dma.done [#allocation15], 1024
    $region77: #{tpu_custom_call.1} parent=1 // pred_fallthru
      _
    // Predicated region
    $region78: #{tpu_custom_call.1} parent=1 // pred_check
      _
    $region79: #{tpu_custom_call.1} parent=1 // pred_check_branch
      %166 = sbr.rel (0) target = $region81
    $region80: #{tpu_custom_call.1} parent=1 // pred_region
      %167 = dma.done [#allocation15], 16
    $region81: #{tpu_custom_call.1} parent=1 // pred_fallthru
      _
    // Predicated region
    $region82: #{tpu_custom_call.1} parent=1 // pred_check
      _
    $region83: #{tpu_custom_call.1} parent=1 // pred_check_branch
      %169 = sbr.rel (0) target = $region85
    $region84: #{tpu_custom_call.1} parent=1 // pred_region
      %170 = dma.done [#allocation18], 1024
    $region85: #{tpu_custom_call.1} parent=1 // pred_fallthru
      _
    // Predicated region
    $region86: #{tpu_custom_call.1} parent=1 // pred_check
      _
    $region87: #{tpu_custom_call.1} parent=1 // pred_check_branch
      %172 = sbr.rel (0) target = $region89
    $region88: #{tpu_custom_call.1} parent=1 // pred_region
      %173 = dma.done [#allocation18], 16
    $region89: #{tpu_custom_call.1} parent=1 // pred_fallthru
      _
    %v175 = vld [vmem:[#allocation2] sm:$0xff]
    %v176 = vpack.c.bf16 %v175, %v175
    %v177 = vld [vmem:[#allocation5] sm:$0x7]
    %v178 = vld [vmem:[#allocation7] sm:$0x1]
    %v180 = vlaneseq
    %v181 = vshrl.u32 %v180, 7
    %v182 = vsub.s32 0, %v181
    %v183 = vrot.slane %v178, %v182
    %vm185 = vcmask 48128
    %v187 = vsel %vm185, %v176, 0
    %vm189 = vcmask 1042432
    %v191 = vsel %vm189, %v177, 0
    %193 = vmatprep.subr.bf16.mxu0 0
    %194 = vmatpush1.bf16.msra.mxu0 %v191
    %195 = vmatprep.subr.bf16.mxu0 0
    %196 = vmatpush1.bf16.msra.mxu0 0
    %197 = vmatprep.subr.bf16.mxu0 0
    %198 = vmatpush1.bf16.msra.mxu0 0
    %199 = vmatprep.subr.bf16.mxu0 0
    %200 = vmatpush1.bf16.msra.mxu0 0
    %201 = vmatprep.subr.bf16.mxu0 0
    %202 = vmatpush1.bf16.msra.mxu0 0
    %203 = vmatprep.subr.bf16.mxu0 0
    %204 = vmatpush1.bf16.msra.mxu0 0
    %205 = vmatprep.subr.bf16.mxu0 0
    %206 = vmatpush1.bf16.msra.mxu0 0
    %207 = vmatprep.subr.bf16.mxu0 0
    %208 = vmatpush1.bf16.msra.mxu0 0
    %209 = vmatprep.subr.bf16.mxu0 0
    %210 = vmatpush1.bf16.msra.mxu0 0
    %211 = vmatprep.subr.bf16.mxu0 0
    %212 = vmatpush1.bf16.msra.mxu0 0
    %213 = vmatprep.subr.bf16.mxu0 0
    %214 = vmatpush1.bf16.msra.mxu0 0
    %215 = vmatprep.subr.bf16.mxu0 0
    %216 = vmatpush1.bf16.msra.mxu0 0
    %217 = vmatprep.subr.bf16.mxu0 0
    %218 = vmatpush1.bf16.msra.mxu0 0
    %219 = vmatprep.subr.bf16.mxu0 0
    %220 = vmatpush1.bf16.msra.mxu0 0
    %221 = vmatprep.subr.bf16.mxu0 0
    %222 = vmatpush1.bf16.msra.mxu0 0
    %223 = vmatprep.subr.bf16.mxu0 0
    %224 = vmatpush1.bf16.msra.mxu0 0
    %225 = vmatprep.mubr.bf16.mxu0 0
    %226 = vmatmul.mubr.bf16.gmra.mrb[0].mxu0 %v187
    %v227 = vpop.f32.mrb[0].mxu0
    %v228 = vadd.f32 %v183, %v227
    %v229 = vpop.f32.mrb[0].mxu0
    %v230 = vpop.f32.mrb[0].mxu0
    %v231 = vpop.f32.mrb[0].mxu0
    %232 = vdwg.mxu0
    %v233 = vmax.f32 %v228, 0.0
    %v234 = vpack.c.bf16 %v233, %v233
    %v235 = vld [vmem:[#allocation8] sm:$0xf]
    %v236 = vld [vmem:[#allocation8 + $0x4] sm:$0xf]
    %v237 = vld [vmem:[#allocation8 + $0x8] sm:$0xf]
    %v238 = vld [vmem:[#allocation8 + $0xc] sm:$0xf]
    %v239 = vld [vmem:[#allocation8 + $0x10] sm:$0xf]
    %v240 = vld [vmem:[#allocation8 + $0x14] sm:$0xf]
    %v241 = vld [vmem:[#allocation8 + $0x18] sm:$0xf]
    %v242 = vld [vmem:[#allocation8 + $0x1c] sm:$0xf]
    %v243 = vld [vmem:[#allocation8 + $0x20] sm:$0xf]
    %v244 = vld [vmem:[#allocation8 + $0x24] sm:$0xf]
    %v245 = vld [vmem:[#allocation8 + $0x28] sm:$0xf]
    %v246 = vld [vmem:[#allocation8 + $0x2c] sm:$0xf]
    %v247 = vld [vmem:[#allocation8 + $0x30] sm:$0xf]
    %v248 = vld [vmem:[#allocation8 + $0x34] sm:$0xf]
    %v249 = vld [vmem:[#allocation8 + $0x38] sm:$0xf]
    %v250 = vld [vmem:[#allocation8 + $0x3c] sm:$0xf]
    %v251 = vld [vmem:[#allocation10] sm:$0x1]
    %v253 = vlaneseq
    %v254 = vshrl.u32 %v253, 7
    %v255 = vsub.s32 0, %v254
    %v256 = vrot.slane %v251, %v255
    %v274 = vunpack.c.l.b16 %v235
    %v275 = vunpack.c.l.b16 %v236
    %v276 = vunpack.c.l.b16 %v237
    %v277 = vunpack.c.l.b16 %v238
    %v278 = vunpack.c.l.b16 %v239
    %v279 = vunpack.c.l.b16 %v240
    %v280 = vunpack.c.l.b16 %v241
    %v281 = vunpack.c.l.b16 %v242
    %v282 = vunpack.c.l.b16 %v243
    %v283 = vunpack.c.l.b16 %v244
    %v284 = vunpack.c.l.b16 %v245
    %v285 = vunpack.c.l.b16 %v246
    %v286 = vunpack.c.l.b16 %v247
    %v287 = vunpack.c.l.b16 %v248
    %v288 = vunpack.c.l.b16 %v249
    %v289 = vunpack.c.l.b16 %v250
    %v290 = vpack.c.b16 %v275, %v274
    %v291 = vpack.c.b16 %v277, %v276
    %v292 = vpack.c.b16 %v279, %v278
    %v293 = vpack.c.b16 %v281, %v280
    %v294 = vpack.c.b16 %v283, %v282
    %v295 = vpack.c.b16 %v285, %v284
    %v296 = vpack.c.b16 %v287, %v286
    %v297 = vpack.c.b16 %v289, %v288
    %306 = vmatprep.subr.bf16.mxu0 0
    %307 = vmatpush1.bf16.msra.mxu0 %v290
    %308 = vmatprep.subr.bf16.mxu0 0
    %309 = vmatpush1.bf16.msra.mxu0 %v291
    %310 = vmatprep.subr.bf16.mxu0 0
    %311 = vmatpush1.bf16.msra.mxu0 %v292
    %312 = vmatprep.subr.bf16.mxu0 0
    %313 = vmatpush1.bf16.msra.mxu0 %v293
    %314 = vmatprep.subr.bf16.mxu0 0
    %315 = vmatpush1.bf16.msra.mxu0 %v294
    %316 = vmatprep.subr.bf16.mxu0 0
    %317 = vmatpush1.bf16.msra.mxu0 %v295
    %318 = vmatprep.subr.bf16.mxu0 0
    %319 = vmatpush1.bf16.msra.mxu0 %v296
    %320 = vmatprep.subr.bf16.mxu0 0
    %321 = vmatpush1.bf16.msra.mxu0 %v297
    %322 = vmatprep.subr.bf16.mxu0 0
    %323 = vmatpush1.bf16.msra.mxu0 0
    %324 = vmatprep.subr.bf16.mxu0 0
    %325 = vmatpush1.bf16.msra.mxu0 0
    %326 = vmatprep.subr.bf16.mxu0 0
    %327 = vmatpush1.bf16.msra.mxu0 0
    %328 = vmatprep.subr.bf16.mxu0 0
    %329 = vmatpush1.bf16.msra.mxu0 0
    %330 = vmatprep.subr.bf16.mxu0 0
    %331 = vmatpush1.bf16.msra.mxu0 0
    %332 = vmatprep.subr.bf16.mxu0 0
    %333 = vmatpush1.bf16.msra.mxu0 0
    %334 = vmatprep.subr.bf16.mxu0 0
    %335 = vmatpush1.bf16.msra.mxu0 0
    %336 = vmatprep.subr.bf16.mxu0 0
    %337 = vmatpush1.bf16.msra.mxu0 0
    %338 = vmatprep.mubr.bf16.mxu0 0
    %339 = vmatmul.mubr.bf16.gmra.mrb[0].mxu0 %v234
    %v340 = vpop.f32.mrb[0].mxu0
    %v341 = vadd.f32 %v256, %v340
    %v342 = vpop.f32.mrb[0].mxu0
    %v343 = vpop.f32.mrb[0].mxu0
    %v344 = vpop.f32.mrb[0].mxu0
    %345 = vdwg.mxu0
    %v346 = vmax.f32 %v341, 0.0
    %v347 = vpack.c.bf16 %v346, %v346
    %v348 = vld [vmem:[#allocation11] sm:$0xf]
    %v349 = vld [vmem:[#allocation11 + $0x4] sm:$0xf]
    %v350 = vld [vmem:[#allocation11 + $0x8] sm:$0xf]
    %v351 = vld [vmem:[#allocation11 + $0xc] sm:$0xf]
    %v352 = vld [vmem:[#allocation11 + $0x10] sm:$0xf]
    %v353 = vld [vmem:[#allocation11 + $0x14] sm:$0xf]
    %v354 = vld [vmem:[#allocation11 + $0x18] sm:$0xf]
    %v355 = vld [vmem:[#allocation11 + $0x1c] sm:$0xf]
    %v356 = vld [vmem:[#allocation11 + $0x20] sm:$0xf]
    %v357 = vld [vmem:[#allocation11 + $0x24] sm:$0xf]
    %v358 = vld [vmem:[#allocation11 + $0x28] sm:$0xf]
    %v359 = vld [vmem:[#allocation11 + $0x2c] sm:$0xf]
    %v360 = vld [vmem:[#allocation11 + $0x30] sm:$0xf]
    %v361 = vld [vmem:[#allocation11 + $0x34] sm:$0xf]
    %v362 = vld [vmem:[#allocation11 + $0x38] sm:$0xf]
    %v363 = vld [vmem:[#allocation11 + $0x3c] sm:$0xf]
    %v364 = vld [vmem:[#allocation13] sm:$0x1]
    %v366 = vlaneseq
    %v367 = vshrl.u32 %v366, 7
    %v368 = vsub.s32 0, %v367
    %v369 = vrot.slane %v364, %v368
    %v387 = vunpack.c.l.b16 %v348
    %v388 = vunpack.c.l.b16 %v349
    %v389 = vunpack.c.l.b16 %v350
    %v390 = vunpack.c.l.b16 %v351
    %v391 = vunpack.c.l.b16 %v352
    %v392 = vunpack.c.l.b16 %v353
    %v393 = vunpack.c.l.b16 %v354
    %v394 = vunpack.c.l.b16 %v355
    %v395 = vunpack.c.l.b16 %v356
    %v396 = vunpack.c.l.b16 %v357
    %v397 = vunpack.c.l.b16 %v358
    %v398 = vunpack.c.l.b16 %v359
    %v399 = vunpack.c.l.b16 %v360
    %v400 = vunpack.c.l.b16 %v361
    %v401 = vunpack.c.l.b16 %v362
    %v402 = vunpack.c.l.b16 %v363
    %v403 = vpack.c.b16 %v388, %v387
    %v404 = vpack.c.b16 %v390, %v389
    %v405 = vpack.c.b16 %v392, %v391
    %v406 = vpack.c.b16 %v394, %v393
    %v407 = vpack.c.b16 %v396, %v395
    %v408 = vpack.c.b16 %v398, %v397
    %v409 = vpack.c.b16 %v400, %v399
    %v410 = vpack.c.b16 %v402, %v401
    %419 = vmatprep.subr.bf16.mxu0 0
    %420 = vmatpush1.bf16.msra.mxu0 %v403
    %421 = vmatprep.subr.bf16.mxu0 0
    %422 = vmatpush1.bf16.msra.mxu0 %v404
    %423 = vmatprep.subr.bf16.mxu0 0
    %424 = vmatpush1.bf16.msra.mxu0 %v405
    %425 = vmatprep.subr.bf16.mxu0 0
    %426 = vmatpush1.bf16.msra.mxu0 %v406
    %427 = vmatprep.subr.bf16.mxu0 0
    %428 = vmatpush1.bf16.msra.mxu0 %v407
    %429 = vmatprep.subr.bf16.mxu0 0
    %430 = vmatpush1.bf16.msra.mxu0 %v408
    %431 = vmatprep.subr.bf16.mxu0 0
    %432 = vmatpush1.bf16.msra.mxu0 %v409
    %433 = vmatprep.subr.bf16.mxu0 0
    %434 = vmatpush1.bf16.msra.mxu0 %v410
    %435 = vmatprep.subr.bf16.mxu0 0
    %436 = vmatpush1.bf16.msra.mxu0 0
    %437 = vmatprep.subr.bf16.mxu0 0
    %438 = vmatpush1.bf16.msra.mxu0 0
    %439 = vmatprep.subr.bf16.mxu0 0
    %440 = vmatpush1.bf16.msra.mxu0 0
    %441 = vmatprep.subr.bf16.mxu0 0
    %442 = vmatpush1.bf16.msra.mxu0 0
    %443 = vmatprep.subr.bf16.mxu0 0
    %444 = vmatpush1.bf16.msra.mxu0 0
    %445 = vmatprep.subr.bf16.mxu0 0
    %446 = vmatpush1.bf16.msra.mxu0 0
    %447 = vmatprep.subr.bf16.mxu0 0
    %448 = vmatpush1.bf16.msra.mxu0 0
    %449 = vmatprep.subr.bf16.mxu0 0
    %450 = vmatpush1.bf16.msra.mxu0 0
    %451 = vmatprep.mubr.bf16.mxu0 0
    %452 = vmatmul.mubr.bf16.gmra.mrb[0].mxu0 %v347
    %v453 = vpop.f32.mrb[0].mxu0
    %v454 = vadd.f32 %v369, %v453
    %v455 = vpop.f32.mrb[0].mxu0
    %v456 = vpop.f32.mrb[0].mxu0
    %v457 = vpop.f32.mrb[0].mxu0
    %458 = vdwg.mxu0
    %v459 = vmax.f32 %v454, 0.0
    %v460 = vpack.c.bf16 %v459, %v459
    %v461 = vld [vmem:[#allocation14] sm:$0xf]
    %v462 = vld [vmem:[#allocation14 + $0x4] sm:$0xf]
    %v463 = vld [vmem:[#allocation14 + $0x8] sm:$0xf]
    %v464 = vld [vmem:[#allocation14 + $0xc] sm:$0xf]
    %v465 = vld [vmem:[#allocation14 + $0x10] sm:$0xf]
    %v466 = vld [vmem:[#allocation14 + $0x14] sm:$0xf]
    %v467 = vld [vmem:[#allocation14 + $0x18] sm:$0xf]
    %v468 = vld [vmem:[#allocation14 + $0x1c] sm:$0xf]
    %v469 = vld [vmem:[#allocation14 + $0x20] sm:$0xf]
    %v470 = vld [vmem:[#allocation14 + $0x24] sm:$0xf]
    %v471 = vld [vmem:[#allocation14 + $0x28] sm:$0xf]
    %v472 = vld [vmem:[#allocation14 + $0x2c] sm:$0xf]
    %v473 = vld [vmem:[#allocation14 + $0x30] sm:$0xf]
    %v474 = vld [vmem:[#allocation14 + $0x34] sm:$0xf]
    %v475 = vld [vmem:[#allocation14 + $0x38] sm:$0xf]
    %v476 = vld [vmem:[#allocation14 + $0x3c] sm:$0xf]
    %v477 = vld [vmem:[#allocation16] sm:$0x1]
    %v479 = vlaneseq
    %v480 = vshrl.u32 %v479, 7
    %v481 = vsub.s32 0, %v480
    %v482 = vrot.slane %v477, %v481
    %v500 = vunpack.c.l.b16 %v461
    %v501 = vunpack.c.l.b16 %v462
    %v502 = vunpack.c.l.b16 %v463
    %v503 = vunpack.c.l.b16 %v464
    %v504 = vunpack.c.l.b16 %v465
    %v505 = vunpack.c.l.b16 %v466
    %v506 = vunpack.c.l.b16 %v467
    %v507 = vunpack.c.l.b16 %v468
    %v508 = vunpack.c.l.b16 %v469
    %v509 = vunpack.c.l.b16 %v470
    %v510 = vunpack.c.l.b16 %v471
    %v511 = vunpack.c.l.b16 %v472
    %v512 = vunpack.c.l.b16 %v473
    %v513 = vunpack.c.l.b16 %v474
    %v514 = vunpack.c.l.b16 %v475
    %v515 = vunpack.c.l.b16 %v476
    %v516 = vpack.c.b16 %v501, %v500
    %v517 = vpack.c.b16 %v503, %v502
    %v518 = vpack.c.b16 %v505, %v504
    %v519 = vpack.c.b16 %v507, %v506
    %v520 = vpack.c.b16 %v509, %v508
    %v521 = vpack.c.b16 %v511, %v510
    %v522 = vpack.c.b16 %v513, %v512
    %v523 = vpack.c.b16 %v515, %v514
    %532 = vmatprep.subr.bf16.mxu0 0
    %533 = vmatpush1.bf16.msra.mxu0 %v516
    %534 = vmatprep.subr.bf16.mxu0 0
    %535 = vmatpush1.bf16.msra.mxu0 %v517
    %536 = vmatprep.subr.bf16.mxu0 0
    %537 = vmatpush1.bf16.msra.mxu0 %v518
    %538 = vmatprep.subr.bf16.mxu0 0
    %539 = vmatpush1.bf16.msra.mxu0 %v519
    %540 = vmatprep.subr.bf16.mxu0 0
    %541 = vmatpush1.bf16.msra.mxu0 %v520
    %542 = vmatprep.subr.bf16.mxu0 0
    %543 = vmatpush1.bf16.msra.mxu0 %v521
    %544 = vmatprep.subr.bf16.mxu0 0
    %545 = vmatpush1.bf16.msra.mxu0 %v522
    %546 = vmatprep.subr.bf16.mxu0 0
    %547 = vmatpush1.bf16.msra.mxu0 %v523
    %548 = vmatprep.subr.bf16.mxu0 0
    %549 = vmatpush1.bf16.msra.mxu0 0
    %550 = vmatprep.subr.bf16.mxu0 0
    %551 = vmatpush1.bf16.msra.mxu0 0
    %552 = vmatprep.subr.bf16.mxu0 0
    %553 = vmatpush1.bf16.msra.mxu0 0
    %554 = vmatprep.subr.bf16.mxu0 0
    %555 = vmatpush1.bf16.msra.mxu0 0
    %556 = vmatprep.subr.bf16.mxu0 0
    %557 = vmatpush1.bf16.msra.mxu0 0
    %558 = vmatprep.subr.bf16.mxu0 0
    %559 = vmatpush1.bf16.msra.mxu0 0
    %560 = vmatprep.subr.bf16.mxu0 0
    %561 = vmatpush1.bf16.msra.mxu0 0
    %562 = vmatprep.subr.bf16.mxu0 0
    %563 = vmatpush1.bf16.msra.mxu0 0
    %564 = vmatprep.mubr.bf16.mxu0 0
    %565 = vmatmul.mubr.bf16.gmra.mrb[0].mxu0 %v460
    %v566 = vpop.f32.mrb[0].mxu0
    %v567 = vadd.f32 %v482, %v566
    %v568 = vpop.f32.mrb[0].mxu0
    %v569 = vpop.f32.mrb[0].mxu0
    %v570 = vpop.f32.mrb[0].mxu0
    %571 = vdwg.mxu0
    %v572 = vmax.f32 %v567, 0.0
    %v573 = vpack.c.bf16 %v572, %v572
    %v574 = vld [vmem:[#allocation17] sm:$0xf]
    %v575 = vld [vmem:[#allocation17 + $0x4] sm:$0xf]
    %v576 = vld [vmem:[#allocation17 + $0x8] sm:$0xf]
    %v577 = vld [vmem:[#allocation17 + $0xc] sm:$0xf]
    %v578 = vld [vmem:[#allocation17 + $0x10] sm:$0xf]
    %v579 = vld [vmem:[#allocation17 + $0x14] sm:$0xf]
    %v580 = vld [vmem:[#allocation17 + $0x18] sm:$0xf]
    %v581 = vld [vmem:[#allocation17 + $0x1c] sm:$0xf]
    %v582 = vld [vmem:[#allocation17 + $0x20] sm:$0xf]
    %v583 = vld [vmem:[#allocation17 + $0x24] sm:$0xf]
    %v584 = vld [vmem:[#allocation17 + $0x28] sm:$0xf]
    %v585 = vld [vmem:[#allocation17 + $0x2c] sm:$0xf]
    %v586 = vld [vmem:[#allocation17 + $0x30] sm:$0xf]
    %v587 = vld [vmem:[#allocation17 + $0x34] sm:$0xf]
    %v588 = vld [vmem:[#allocation17 + $0x38] sm:$0xf]
    %v589 = vld [vmem:[#allocation17 + $0x3c] sm:$0xf]
    %v590 = vld [vmem:[#allocation19] sm:$0x1]
    %v592 = vlaneseq
    %v593 = vshrl.u32 %v592, 7
    %v594 = vsub.s32 0, %v593
    %v595 = vrot.slane %v590, %v594
    %v613 = vunpack.c.l.b16 %v574
    %v614 = vunpack.c.l.b16 %v575
    %v615 = vunpack.c.l.b16 %v576
    %v616 = vunpack.c.l.b16 %v577
    %v617 = vunpack.c.l.b16 %v578
    %v618 = vunpack.c.l.b16 %v579
    %v619 = vunpack.c.l.b16 %v580
    %v620 = vunpack.c.l.b16 %v581
    %v621 = vunpack.c.l.b16 %v582
    %v622 = vunpack.c.l.b16 %v583
    %v623 = vunpack.c.l.b16 %v584
    %v624 = vunpack.c.l.b16 %v585
    %v625 = vunpack.c.l.b16 %v586
    %v626 = vunpack.c.l.b16 %v587
    %v627 = vunpack.c.l.b16 %v588
    %v628 = vunpack.c.l.b16 %v589
    %v629 = vpack.c.b16 %v614, %v613
    %v630 = vpack.c.b16 %v616, %v615
    %v631 = vpack.c.b16 %v618, %v617
    %v632 = vpack.c.b16 %v620, %v619
    %v633 = vpack.c.b16 %v622, %v621
    %v634 = vpack.c.b16 %v624, %v623
    %v635 = vpack.c.b16 %v626, %v625
    %v636 = vpack.c.b16 %v628, %v627
    %645 = vmatprep.subr.bf16.mxu0 0
    %646 = vmatpush1.bf16.msra.mxu0 %v629
    %647 = vmatprep.subr.bf16.mxu0 0
    %648 = vmatpush1.bf16.msra.mxu0 %v630
    %649 = vmatprep.subr.bf16.mxu0 0
    %650 = vmatpush1.bf16.msra.mxu0 %v631
    %651 = vmatprep.subr.bf16.mxu0 0
    %652 = vmatpush1.bf16.msra.mxu0 %v632
    %653 = vmatprep.subr.bf16.mxu0 0
    %654 = vmatpush1.bf16.msra.mxu0 %v633
    %655 = vmatprep.subr.bf16.mxu0 0
    %656 = vmatpush1.bf16.msra.mxu0 %v634
    %657 = vmatprep.subr.bf16.mxu0 0
    %658 = vmatpush1.bf16.msra.mxu0 %v635
    %659 = vmatprep.subr.bf16.mxu0 0
    %660 = vmatpush1.bf16.msra.mxu0 %v636
    %661 = vmatprep.subr.bf16.mxu0 0
    %662 = vmatpush1.bf16.msra.mxu0 0
    %663 = vmatprep.subr.bf16.mxu0 0
    %664 = vmatpush1.bf16.msra.mxu0 0
    %665 = vmatprep.subr.bf16.mxu0 0
    %666 = vmatpush1.bf16.msra.mxu0 0
    %667 = vmatprep.subr.bf16.mxu0 0
    %668 = vmatpush1.bf16.msra.mxu0 0
    %669 = vmatprep.subr.bf16.mxu0 0
    %670 = vmatpush1.bf16.msra.mxu0 0
    %671 = vmatprep.subr.bf16.mxu0 0
    %672 = vmatpush1.bf16.msra.mxu0 0
    %673 = vmatprep.subr.bf16.mxu0 0
    %674 = vmatpush1.bf16.msra.mxu0 0
    %675 = vmatprep.subr.bf16.mxu0 0
    %676 = vmatpush1.bf16.msra.mxu0 0
    %677 = vmatprep.mubr.bf16.mxu0 0
    %678 = vmatmul.mubr.bf16.gmra.mrb[0].mxu0 %v573
    %v679 = vpop.f32.mrb[0].mxu0
    %v680 = vadd.f32 %v595, %v679
    %v681 = vpop.f32.mrb[0].mxu0
    %v682 = vpop.f32.mrb[0].mxu0
    %v683 = vpop.f32.mrb[0].mxu0
    %684 = vdwg.mxu0
    %v685 = vtanh.pop %v680
    %vm686 = vcmask 15360
    %687 = vst.msk [vmem:[#allocation20] sm:$0xff] %vm686, %v685
    // Predicated region
    $region90: #{tpu_custom_call.1} parent=1 // pred_check
      _
    $region91: #{tpu_custom_call.1} parent=1 // pred_check_branch
      %689 = sbr.rel (0) target = $region93
    $region92: #{tpu_custom_call.1} parent=1 // pred_region
      %s691 = ssub.s32 128, 128
      %692 = vsyncadd [#allocation4], %s691
      %s694 = sshll.u32 [#allocation20], 4
      %s695 = int_to_ptr.vmem [resolvable:$true] %s694
      %697 = dma.vmem_to_hbm [thread:$0]  %s695, 128, %s11, [#allocation4]
    $region93: #{tpu_custom_call.1} parent=1 // pred_fallthru
      _
    // Predicated region
    $region94: #{tpu_custom_call.1} parent=1 // pred_check
      _
    $region95: #{tpu_custom_call.1} parent=1 // pred_check_branch
      %699 = sbr.rel (0) target = $region97
    $region96: #{tpu_custom_call.1} parent=1 // pred_region
      %700 = dma.done [#allocation4], 128
    $region97: #{tpu_custom_call.1} parent=1 // pred_fallthru
      _
    %701 = vsyncpa [#allocation3], 1
    %702 = vsyncpa [#allocation6], 1
    %703 = vsyncpa [#allocation9], 1
    %704 = vsyncpa [#allocation12], 1
    %705 = vsyncpa [#allocation15], 1
    %706 = vsyncpa [#allocation18], 1
    %707 = vsyncpa [#allocation4], 1

</llo_original>
